<compile_context>
chip_gen: v5e
topology: v5e:2x2
jax: 0.10.0
libtpu: 0.0.40
codegen_flags: <defaults>
</compile_context>

<pallas_src>
import jax
import jax.numpy as jnp
from jax.experimental import pallas as pl
from jax.experimental.pallas import tpu as pltpu

HIDDEN_SIZE = 16
INPUT_SIZE = 1
OUTPUT_SIZE = 1


def _pairwise_tree_sum(terms):
    """Log-depth add tree (shorter serial dependency than a linear chain)."""
    while len(terms) > 1:
        nxt = [terms[i] + terms[i + 1] for i in range(0, len(terms) - 1, 2)]
        if len(terms) % 2:
            nxt.append(terms[-1])
        terms = nxt
    return terms[0]


def rnn_kernel(x_ref, p_ref, out_ref):
    # x_ref:   (T, B, 1)  time-major input (input_size == 1)
    # p_ref:   (H+4, H)   packed parameters:
    #            rows [0, H) : W_hh^T
    #            row  H      : W_ih^T row   (input_size == 1)
    #            row  H + 1  : b_ih + b_hh  (fused)
    #            row  H + 2  : W_fc row     (output_size == 1)
    #            row  H + 3  : [b_fc, 0, ...]
    # out_ref: (B, O)
    T, B, _ = x_ref.shape
    H = p_ref.shape[1]

    whh_t = p_ref[0:H, :]                   # (H, H) = W_hh^T, tile-aligned load
    w_ih = p_ref[H:H + 1, :]                # (1, H)
    b = p_ref[H + 1:H + 2, :]               # (1, H)  fused recurrent bias
    w_fc = p_ref[H + 2:H + 3, :]            # (1, H)
    b_fc = p_ref[H + 3:H + 4, 0:1]          # (1, 1)

    # ---- parallel precompute, off the serial chain --------------------------
    # input_size == 1: x_t @ W_ih^T is a lane-broadcast multiply (no MXU).
    # Time-major so the per-step slice below is a leading-axis tile.
    xw = x_ref[...] * w_ih[None, :, :] + b[None, :, :]          # (T, B, H)

    # Hoist the weight-row broadcasts out of the unrolled loop.
    whh_rows = [jnp.broadcast_to(whh_t[k:k + 1, :], (B, H)) for k in range(H)]

    # ---- serial recurrence: fully unrolled, h lives in vregs ----------------
    # (B,16)x(16,16) per step on the VPU/XLU: 16 lane-broadcasts of h columns,
    # 16 multiplies, a log2(16)-deep add tree.  Avoids MXU fill/drain + result
    # FIFO pop latency on every step of the serial chain.
    h = jnp.zeros((B, H), jnp.float32)
    for t in range(T):                                           # T static & tiny
        terms = [h[:, k:k + 1] * whh_rows[k] for k in range(H)]
        h = jnp.tanh(xw[t] + _pairwise_tree_sum(terms))

    # ---- FC head (O == 1): lane reduce on VPU/XLU, no MXU round trip --------
    out_ref[...] = jnp.sum(h * w_fc, axis=-1, keepdims=True) + b_fc


def rnn_forward(x, w_ih, w_hh, b_ih, b_hh, w_fc, b_fc):
    """x: (B, T, I) float32 (batch_first, like the PyTorch module). Returns (B, O)."""
    B, T, I = x.shape
    H = w_ih.shape[0]
    O = w_fc.shape[0]
    assert I == 1 and O == 1, "kernel exploits input_size == output_size == 1"

    # Time-major input (free layout plumbing on 16 elements).
    x_t = jnp.transpose(x.astype(jnp.float32), (1, 0, 2))              # (T, B, 1)

    # Pack every parameter into one operand -> one HBM->VMEM DMA.
    params = jnp.zeros((H + 4, H), jnp.float32)
    params = params.at[0:H, :].set(w_hh.T.astype(jnp.float32))         # W_hh^T
    params = params.at[H, :].set(w_ih[:, 0].astype(jnp.float32))       # W_ih^T row
    params = params.at[H + 1, :].set((b_ih + b_hh).astype(jnp.float32))
    params = params.at[H + 2, :].set(w_fc[0, :].astype(jnp.float32))   # W_fc row
    params = params.at[H + 3, 0].set(b_fc[0].astype(jnp.float32))

    vmem = pl.BlockSpec(memory_space=pltpu.MemorySpace.VMEM)
    return pl.pallas_call(
        rnn_kernel,
        out_shape=jax.ShapeDtypeStruct((B, O), jnp.float32),
        in_specs=[vmem, vmem],            # no grid -> no pipelined loop wrapper
        out_specs=vmem,
    )(x_t, params)


def rnn_reference(x, w_ih, w_hh, b_ih, b_hh, w_fc, b_fc):
    """Pure-JAX reference mirroring the PyTorch forward."""
    B, T, I = x.shape
    H = w_ih.shape[0]
    h = jnp.zeros((B, H), jnp.float32)
    for t in range(T):
        h = jnp.tanh(x[:, t, :] @ w_ih.T + b_ih + h @ w_hh.T + b_hh)
    return h @ w_fc.T + b_fc


if __name__ == "__main__":
    key = jax.random.PRNGKey(0)
    B, T = 2, 8
    k_x, k1, k2, k3, k4, k5, k6 = jax.random.split(key, 7)

    # Deterministic parameter init (PyTorch-style uniform(-1/sqrt(H), 1/sqrt(H))).
    bound = 1.0 / (HIDDEN_SIZE ** 0.5)
    u = lambda k, shape: jax.random.uniform(k, shape, jnp.float32, -bound, bound)

    x = jax.random.normal(k_x, (B, T, INPUT_SIZE), jnp.float32)   # unsqueeze(-1) analogue
    w_ih = u(k1, (HIDDEN_SIZE, INPUT_SIZE))
    w_hh = u(k2, (HIDDEN_SIZE, HIDDEN_SIZE))
    b_ih = u(k3, (HIDDEN_SIZE,))
    b_hh = u(k4, (HIDDEN_SIZE,))
    w_fc = u(k5, (OUTPUT_SIZE, HIDDEN_SIZE))
    b_fc = u(k6, (OUTPUT_SIZE,))

    out = rnn_forward(x, w_ih, w_hh, b_ih, b_hh, w_fc, b_fc)
    out = jax.block_until_ready(out)

    ref = rnn_reference(x, w_ih, w_hh, b_ih, b_hh, w_fc, b_fc)
    assert out.shape == (B, OUTPUT_SIZE)
    assert jnp.allclose(out, ref, atol=1e-5, rtol=1e-5), (out, ref)

    print("KERNEL_OK")
</pallas_src>

<mosaic_0001>
module attributes {stable_mosaic.version = 11 : i64} {
  func.func @rnn_kernel(%arg0: memref<8x2x1xf32, #tpu.memory_space<vmem>>, %arg1: memref<20x16xf32, #tpu.memory_space<vmem>>, %arg2: memref<2x1xf32, #tpu.memory_space<vmem>>) attributes {dimension_semantics = [], scalar_prefetch = 0 : i64, scratch_operands = 0 : i64, tpu.core_type = #tpu.core_type<tc>} {
    %c0 = arith.constant 0 : index
    %c0_0 = arith.constant 0 : index
    %0 = vector.load %arg1[%c0, %c0_0] : memref<20x16xf32, #tpu.memory_space<vmem>>, vector<16x16xf32>
    %c16 = arith.constant 16 : index
    %c0_1 = arith.constant 0 : index
    %1 = vector.load %arg1[%c16, %c0_1] : memref<20x16xf32, #tpu.memory_space<vmem>>, vector<1x16xf32>
    %c17 = arith.constant 17 : index
    %c0_2 = arith.constant 0 : index
    %2 = vector.load %arg1[%c17, %c0_2] : memref<20x16xf32, #tpu.memory_space<vmem>>, vector<1x16xf32>
    %c18 = arith.constant 18 : index
    %c0_3 = arith.constant 0 : index
    %3 = vector.load %arg1[%c18, %c0_3] : memref<20x16xf32, #tpu.memory_space<vmem>>, vector<1x16xf32>
    %c19 = arith.constant 19 : index
    %c0_4 = arith.constant 0 : index
    %4 = vector.load %arg1[%c19, %c0_4] : memref<20x16xf32, #tpu.memory_space<vmem>>, vector<1x1xf32>
    %c0_5 = arith.constant 0 : index
    %c0_6 = arith.constant 0 : index
    %c0_7 = arith.constant 0 : index
    %5 = vector.load %arg0[%c0_5, %c0_6, %c0_7] : memref<8x2x1xf32, #tpu.memory_space<vmem>>, vector<8x2x1xf32>
    %6 = vector.shape_cast %1 : vector<1x16xf32> to vector<1x1x16xf32>
    %7 = vector.broadcast %5 : vector<8x2x1xf32> to vector<8x2x16xf32>
    %8 = vector.broadcast %6 : vector<1x1x16xf32> to vector<8x2x16xf32>
    %9 = arith.mulf %7, %8 : vector<8x2x16xf32>
    %10 = vector.shape_cast %2 : vector<1x16xf32> to vector<1x1x16xf32>
    %11 = vector.broadcast %10 : vector<1x1x16xf32> to vector<8x2x16xf32>
    %12 = arith.addf %9, %11 : vector<8x2x16xf32>
    %13 = vector.extract_strided_slice %0 {offsets = [0, 0], sizes = [1, 16], strides = [1, 1]} : vector<16x16xf32> to vector<1x16xf32>
    %14 = vector.shape_cast %13 : vector<1x16xf32> to vector<1x16xf32>
    %15 = vector.broadcast %14 : vector<1x16xf32> to vector<2x16xf32>
    %16 = vector.extract_strided_slice %0 {offsets = [1, 0], sizes = [1, 16], strides = [1, 1]} : vector<16x16xf32> to vector<1x16xf32>
    %17 = vector.shape_cast %16 : vector<1x16xf32> to vector<1x16xf32>
    %18 = vector.broadcast %17 : vector<1x16xf32> to vector<2x16xf32>
    %19 = vector.extract_strided_slice %0 {offsets = [2, 0], sizes = [1, 16], strides = [1, 1]} : vector<16x16xf32> to vector<1x16xf32>
    %20 = vector.shape_cast %19 : vector<1x16xf32> to vector<1x16xf32>
    %21 = vector.broadcast %20 : vector<1x16xf32> to vector<2x16xf32>
    %22 = vector.extract_strided_slice %0 {offsets = [3, 0], sizes = [1, 16], strides = [1, 1]} : vector<16x16xf32> to vector<1x16xf32>
    %23 = vector.shape_cast %22 : vector<1x16xf32> to vector<1x16xf32>
    %24 = vector.broadcast %23 : vector<1x16xf32> to vector<2x16xf32>
    %25 = vector.extract_strided_slice %0 {offsets = [4, 0], sizes = [1, 16], strides = [1, 1]} : vector<16x16xf32> to vector<1x16xf32>
    %26 = vector.shape_cast %25 : vector<1x16xf32> to vector<1x16xf32>
    %27 = vector.broadcast %26 : vector<1x16xf32> to vector<2x16xf32>
    %28 = vector.extract_strided_slice %0 {offsets = [5, 0], sizes = [1, 16], strides = [1, 1]} : vector<16x16xf32> to vector<1x16xf32>
    %29 = vector.shape_cast %28 : vector<1x16xf32> to vector<1x16xf32>
    %30 = vector.broadcast %29 : vector<1x16xf32> to vector<2x16xf32>
    %31 = vector.extract_strided_slice %0 {offsets = [6, 0], sizes = [1, 16], strides = [1, 1]} : vector<16x16xf32> to vector<1x16xf32>
    %32 = vector.shape_cast %31 : vector<1x16xf32> to vector<1x16xf32>
    %33 = vector.broadcast %32 : vector<1x16xf32> to vector<2x16xf32>
    %34 = vector.extract_strided_slice %0 {offsets = [7, 0], sizes = [1, 16], strides = [1, 1]} : vector<16x16xf32> to vector<1x16xf32>
    %35 = vector.shape_cast %34 : vector<1x16xf32> to vector<1x16xf32>
    %36 = vector.broadcast %35 : vector<1x16xf32> to vector<2x16xf32>
    %37 = vector.extract_strided_slice %0 {offsets = [8, 0], sizes = [1, 16], strides = [1, 1]} : vector<16x16xf32> to vector<1x16xf32>
    %38 = vector.shape_cast %37 : vector<1x16xf32> to vector<1x16xf32>
    %39 = vector.broadcast %38 : vector<1x16xf32> to vector<2x16xf32>
    %40 = vector.extract_strided_slice %0 {offsets = [9, 0], sizes = [1, 16], strides = [1, 1]} : vector<16x16xf32> to vector<1x16xf32>
    %41 = vector.shape_cast %40 : vector<1x16xf32> to vector<1x16xf32>
    %42 = vector.broadcast %41 : vector<1x16xf32> to vector<2x16xf32>
    %43 = vector.extract_strided_slice %0 {offsets = [10, 0], sizes = [1, 16], strides = [1, 1]} : vector<16x16xf32> to vector<1x16xf32>
    %44 = vector.shape_cast %43 : vector<1x16xf32> to vector<1x16xf32>
    %45 = vector.broadcast %44 : vector<1x16xf32> to vector<2x16xf32>
    %46 = vector.extract_strided_slice %0 {offsets = [11, 0], sizes = [1, 16], strides = [1, 1]} : vector<16x16xf32> to vector<1x16xf32>
    %47 = vector.shape_cast %46 : vector<1x16xf32> to vector<1x16xf32>
    %48 = vector.broadcast %47 : vector<1x16xf32> to vector<2x16xf32>
    %49 = vector.extract_strided_slice %0 {offsets = [12, 0], sizes = [1, 16], strides = [1, 1]} : vector<16x16xf32> to vector<1x16xf32>
    %50 = vector.shape_cast %49 : vector<1x16xf32> to vector<1x16xf32>
    %51 = vector.broadcast %50 : vector<1x16xf32> to vector<2x16xf32>
    %52 = vector.extract_strided_slice %0 {offsets = [13, 0], sizes = [1, 16], strides = [1, 1]} : vector<16x16xf32> to vector<1x16xf32>
    %53 = vector.shape_cast %52 : vector<1x16xf32> to vector<1x16xf32>
    %54 = vector.broadcast %53 : vector<1x16xf32> to vector<2x16xf32>
    %55 = vector.extract_strided_slice %0 {offsets = [14, 0], sizes = [1, 16], strides = [1, 1]} : vector<16x16xf32> to vector<1x16xf32>
    %56 = vector.shape_cast %55 : vector<1x16xf32> to vector<1x16xf32>
    %57 = vector.broadcast %56 : vector<1x16xf32> to vector<2x16xf32>
    %58 = vector.extract_strided_slice %0 {offsets = [15, 0], sizes = [1, 16], strides = [1, 1]} : vector<16x16xf32> to vector<1x16xf32>
    %59 = vector.shape_cast %58 : vector<1x16xf32> to vector<1x16xf32>
    %60 = vector.broadcast %59 : vector<1x16xf32> to vector<2x16xf32>
    %cst = arith.constant 0.000000e+00 : f32
    %61 = vector.broadcast %cst : f32 to vector<2x16xf32>
    %62 = vector.extract_strided_slice %61 {offsets = [0, 0], sizes = [2, 1], strides = [1, 1]} : vector<2x16xf32> to vector<2x1xf32>
    %63 = vector.broadcast %62 : vector<2x1xf32> to vector<2x16xf32>
    %64 = arith.mulf %63, %15 : vector<2x16xf32>
    %65 = vector.extract_strided_slice %61 {offsets = [0, 1], sizes = [2, 1], strides = [1, 1]} : vector<2x16xf32> to vector<2x1xf32>
    %66 = vector.broadcast %65 : vector<2x1xf32> to vector<2x16xf32>
    %67 = arith.mulf %66, %18 : vector<2x16xf32>
    %68 = vector.extract_strided_slice %61 {offsets = [0, 2], sizes = [2, 1], strides = [1, 1]} : vector<2x16xf32> to vector<2x1xf32>
    %69 = vector.broadcast %68 : vector<2x1xf32> to vector<2x16xf32>
    %70 = arith.mulf %69, %21 : vector<2x16xf32>
    %71 = vector.extract_strided_slice %61 {offsets = [0, 3], sizes = [2, 1], strides = [1, 1]} : vector<2x16xf32> to vector<2x1xf32>
    %72 = vector.broadcast %71 : vector<2x1xf32> to vector<2x16xf32>
    %73 = arith.mulf %72, %24 : vector<2x16xf32>
    %74 = vector.extract_strided_slice %61 {offsets = [0, 4], sizes = [2, 1], strides = [1, 1]} : vector<2x16xf32> to vector<2x1xf32>
    %75 = vector.broadcast %74 : vector<2x1xf32> to vector<2x16xf32>
    %76 = arith.mulf %75, %27 : vector<2x16xf32>
    %77 = vector.extract_strided_slice %61 {offsets = [0, 5], sizes = [2, 1], strides = [1, 1]} : vector<2x16xf32> to vector<2x1xf32>
    %78 = vector.broadcast %77 : vector<2x1xf32> to vector<2x16xf32>
    %79 = arith.mulf %78, %30 : vector<2x16xf32>
    %80 = vector.extract_strided_slice %61 {offsets = [0, 6], sizes = [2, 1], strides = [1, 1]} : vector<2x16xf32> to vector<2x1xf32>
    %81 = vector.broadcast %80 : vector<2x1xf32> to vector<2x16xf32>
    %82 = arith.mulf %81, %33 : vector<2x16xf32>
    %83 = vector.extract_strided_slice %61 {offsets = [0, 7], sizes = [2, 1], strides = [1, 1]} : vector<2x16xf32> to vector<2x1xf32>
    %84 = vector.broadcast %83 : vector<2x1xf32> to vector<2x16xf32>
    %85 = arith.mulf %84, %36 : vector<2x16xf32>
    %86 = vector.extract_strided_slice %61 {offsets = [0, 8], sizes = [2, 1], strides = [1, 1]} : vector<2x16xf32> to vector<2x1xf32>
    %87 = vector.broadcast %86 : vector<2x1xf32> to vector<2x16xf32>
    %88 = arith.mulf %87, %39 : vector<2x16xf32>
    %89 = vector.extract_strided_slice %61 {offsets = [0, 9], sizes = [2, 1], strides = [1, 1]} : vector<2x16xf32> to vector<2x1xf32>
    %90 = vector.broadcast %89 : vector<2x1xf32> to vector<2x16xf32>
    %91 = arith.mulf %90, %42 : vector<2x16xf32>
    %92 = vector.extract_strided_slice %61 {offsets = [0, 10], sizes = [2, 1], strides = [1, 1]} : vector<2x16xf32> to vector<2x1xf32>
    %93 = vector.broadcast %92 : vector<2x1xf32> to vector<2x16xf32>
    %94 = arith.mulf %93, %45 : vector<2x16xf32>
    %95 = vector.extract_strided_slice %61 {offsets = [0, 11], sizes = [2, 1], strides = [1, 1]} : vector<2x16xf32> to vector<2x1xf32>
    %96 = vector.broadcast %95 : vector<2x1xf32> to vector<2x16xf32>
    %97 = arith.mulf %96, %48 : vector<2x16xf32>
    %98 = vector.extract_strided_slice %61 {offsets = [0, 12], sizes = [2, 1], strides = [1, 1]} : vector<2x16xf32> to vector<2x1xf32>
    %99 = vector.broadcast %98 : vector<2x1xf32> to vector<2x16xf32>
    %100 = arith.mulf %99, %51 : vector<2x16xf32>
    %101 = vector.extract_strided_slice %61 {offsets = [0, 13], sizes = [2, 1], strides = [1, 1]} : vector<2x16xf32> to vector<2x1xf32>
    %102 = vector.broadcast %101 : vector<2x1xf32> to vector<2x16xf32>
    %103 = arith.mulf %102, %54 : vector<2x16xf32>
    %104 = vector.extract_strided_slice %61 {offsets = [0, 14], sizes = [2, 1], strides = [1, 1]} : vector<2x16xf32> to vector<2x1xf32>
    %105 = vector.broadcast %104 : vector<2x1xf32> to vector<2x16xf32>
    %106 = arith.mulf %105, %57 : vector<2x16xf32>
    %107 = vector.extract_strided_slice %61 {offsets = [0, 15], sizes = [2, 1], strides = [1, 1]} : vector<2x16xf32> to vector<2x1xf32>
    %108 = vector.broadcast %107 : vector<2x1xf32> to vector<2x16xf32>
    %109 = arith.mulf %108, %60 : vector<2x16xf32>
    %110 = vector.extract_strided_slice %12 {offsets = [0, 0, 0], sizes = [1, 2, 16], strides = [1, 1, 1]} : vector<8x2x16xf32> to vector<1x2x16xf32>
    %111 = vector.shape_cast %110 : vector<1x2x16xf32> to vector<2x16xf32>
    %112 = arith.addf %64, %67 : vector<2x16xf32>
    %113 = arith.addf %70, %73 : vector<2x16xf32>
    %114 = arith.addf %76, %79 : vector<2x16xf32>
    %115 = arith.addf %82, %85 : vector<2x16xf32>
    %116 = arith.addf %88, %91 : vector<2x16xf32>
    %117 = arith.addf %94, %97 : vector<2x16xf32>
    %118 = arith.addf %100, %103 : vector<2x16xf32>
    %119 = arith.addf %106, %109 : vector<2x16xf32>
    %120 = arith.addf %112, %113 : vector<2x16xf32>
    %121 = arith.addf %114, %115 : vector<2x16xf32>
    %122 = arith.addf %116, %117 : vector<2x16xf32>
    %123 = arith.addf %118, %119 : vector<2x16xf32>
    %124 = arith.addf %120, %121 : vector<2x16xf32>
    %125 = arith.addf %122, %123 : vector<2x16xf32>
    %126 = arith.addf %124, %125 : vector<2x16xf32>
    %127 = arith.addf %111, %126 : vector<2x16xf32>
    %128 = math.tanh %127 : vector<2x16xf32>
    %129 = vector.extract_strided_slice %128 {offsets = [0, 0], sizes = [2, 1], strides = [1, 1]} : vector<2x16xf32> to vector<2x1xf32>
    %130 = vector.broadcast %129 : vector<2x1xf32> to vector<2x16xf32>
    %131 = arith.mulf %130, %15 : vector<2x16xf32>
    %132 = vector.extract_strided_slice %128 {offsets = [0, 1], sizes = [2, 1], strides = [1, 1]} : vector<2x16xf32> to vector<2x1xf32>
    %133 = vector.broadcast %132 : vector<2x1xf32> to vector<2x16xf32>
    %134 = arith.mulf %133, %18 : vector<2x16xf32>
    %135 = vector.extract_strided_slice %128 {offsets = [0, 2], sizes = [2, 1], strides = [1, 1]} : vector<2x16xf32> to vector<2x1xf32>
    %136 = vector.broadcast %135 : vector<2x1xf32> to vector<2x16xf32>
    %137 = arith.mulf %136, %21 : vector<2x16xf32>
    %138 = vector.extract_strided_slice %128 {offsets = [0, 3], sizes = [2, 1], strides = [1, 1]} : vector<2x16xf32> to vector<2x1xf32>
    %139 = vector.broadcast %138 : vector<2x1xf32> to vector<2x16xf32>
    %140 = arith.mulf %139, %24 : vector<2x16xf32>
    %141 = vector.extract_strided_slice %128 {offsets = [0, 4], sizes = [2, 1], strides = [1, 1]} : vector<2x16xf32> to vector<2x1xf32>
    %142 = vector.broadcast %141 : vector<2x1xf32> to vector<2x16xf32>
    %143 = arith.mulf %142, %27 : vector<2x16xf32>
    %144 = vector.extract_strided_slice %128 {offsets = [0, 5], sizes = [2, 1], strides = [1, 1]} : vector<2x16xf32> to vector<2x1xf32>
    %145 = vector.broadcast %144 : vector<2x1xf32> to vector<2x16xf32>
    %146 = arith.mulf %145, %30 : vector<2x16xf32>
    %147 = vector.extract_strided_slice %128 {offsets = [0, 6], sizes = [2, 1], strides = [1, 1]} : vector<2x16xf32> to vector<2x1xf32>
    %148 = vector.broadcast %147 : vector<2x1xf32> to vector<2x16xf32>
    %149 = arith.mulf %148, %33 : vector<2x16xf32>
    %150 = vector.extract_strided_slice %128 {offsets = [0, 7], sizes = [2, 1], strides = [1, 1]} : vector<2x16xf32> to vector<2x1xf32>
    %151 = vector.broadcast %150 : vector<2x1xf32> to vector<2x16xf32>
    %152 = arith.mulf %151, %36 : vector<2x16xf32>
    %153 = vector.extract_strided_slice %128 {offsets = [0, 8], sizes = [2, 1], strides = [1, 1]} : vector<2x16xf32> to vector<2x1xf32>
    %154 = vector.broadcast %153 : vector<2x1xf32> to vector<2x16xf32>
    %155 = arith.mulf %154, %39 : vector<2x16xf32>
    %156 = vector.extract_strided_slice %128 {offsets = [0, 9], sizes = [2, 1], strides = [1, 1]} : vector<2x16xf32> to vector<2x1xf32>
    %157 = vector.broadcast %156 : vector<2x1xf32> to vector<2x16xf32>
    %158 = arith.mulf %157, %42 : vector<2x16xf32>
    %159 = vector.extract_strided_slice %128 {offsets = [0, 10], sizes = [2, 1], strides = [1, 1]} : vector<2x16xf32> to vector<2x1xf32>
    %160 = vector.broadcast %159 : vector<2x1xf32> to vector<2x16xf32>
    %161 = arith.mulf %160, %45 : vector<2x16xf32>
    %162 = vector.extract_strided_slice %128 {offsets = [0, 11], sizes = [2, 1], strides = [1, 1]} : vector<2x16xf32> to vector<2x1xf32>
    %163 = vector.broadcast %162 : vector<2x1xf32> to vector<2x16xf32>
    %164 = arith.mulf %163, %48 : vector<2x16xf32>
    %165 = vector.extract_strided_slice %128 {offsets = [0, 12], sizes = [2, 1], strides = [1, 1]} : vector<2x16xf32> to vector<2x1xf32>
    %166 = vector.broadcast %165 : vector<2x1xf32> to vector<2x16xf32>
    %167 = arith.mulf %166, %51 : vector<2x16xf32>
    %168 = vector.extract_strided_slice %128 {offsets = [0, 13], sizes = [2, 1], strides = [1, 1]} : vector<2x16xf32> to vector<2x1xf32>
    %169 = vector.broadcast %168 : vector<2x1xf32> to vector<2x16xf32>
    %170 = arith.mulf %169, %54 : vector<2x16xf32>
    %171 = vector.extract_strided_slice %128 {offsets = [0, 14], sizes = [2, 1], strides = [1, 1]} : vector<2x16xf32> to vector<2x1xf32>
    %172 = vector.broadcast %171 : vector<2x1xf32> to vector<2x16xf32>
    %173 = arith.mulf %172, %57 : vector<2x16xf32>
    %174 = vector.extract_strided_slice %128 {offsets = [0, 15], sizes = [2, 1], strides = [1, 1]} : vector<2x16xf32> to vector<2x1xf32>
    %175 = vector.broadcast %174 : vector<2x1xf32> to vector<2x16xf32>
    %176 = arith.mulf %175, %60 : vector<2x16xf32>
    %177 = vector.extract_strided_slice %12 {offsets = [1, 0, 0], sizes = [1, 2, 16], strides = [1, 1, 1]} : vector<8x2x16xf32> to vector<1x2x16xf32>
    %178 = vector.shape_cast %177 : vector<1x2x16xf32> to vector<2x16xf32>
    %179 = arith.addf %131, %134 : vector<2x16xf32>
    %180 = arith.addf %137, %140 : vector<2x16xf32>
    %181 = arith.addf %143, %146 : vector<2x16xf32>
    %182 = arith.addf %149, %152 : vector<2x16xf32>
    %183 = arith.addf %155, %158 : vector<2x16xf32>
    %184 = arith.addf %161, %164 : vector<2x16xf32>
    %185 = arith.addf %167, %170 : vector<2x16xf32>
    %186 = arith.addf %173, %176 : vector<2x16xf32>
    %187 = arith.addf %179, %180 : vector<2x16xf32>
    %188 = arith.addf %181, %182 : vector<2x16xf32>
    %189 = arith.addf %183, %184 : vector<2x16xf32>
    %190 = arith.addf %185, %186 : vector<2x16xf32>
    %191 = arith.addf %187, %188 : vector<2x16xf32>
    %192 = arith.addf %189, %190 : vector<2x16xf32>
    %193 = arith.addf %191, %192 : vector<2x16xf32>
    %194 = arith.addf %178, %193 : vector<2x16xf32>
    %195 = math.tanh %194 : vector<2x16xf32>
    %196 = vector.extract_strided_slice %195 {offsets = [0, 0], sizes = [2, 1], strides = [1, 1]} : vector<2x16xf32> to vector<2x1xf32>
    %197 = vector.broadcast %196 : vector<2x1xf32> to vector<2x16xf32>
    %198 = arith.mulf %197, %15 : vector<2x16xf32>
    %199 = vector.extract_strided_slice %195 {offsets = [0, 1], sizes = [2, 1], strides = [1, 1]} : vector<2x16xf32> to vector<2x1xf32>
    %200 = vector.broadcast %199 : vector<2x1xf32> to vector<2x16xf32>
    %201 = arith.mulf %200, %18 : vector<2x16xf32>
    %202 = vector.extract_strided_slice %195 {offsets = [0, 2], sizes = [2, 1], strides = [1, 1]} : vector<2x16xf32> to vector<2x1xf32>
    %203 = vector.broadcast %202 : vector<2x1xf32> to vector<2x16xf32>
    %204 = arith.mulf %203, %21 : vector<2x16xf32>
    %205 = vector.extract_strided_slice %195 {offsets = [0, 3], sizes = [2, 1], strides = [1, 1]} : vector<2x16xf32> to vector<2x1xf32>
    %206 = vector.broadcast %205 : vector<2x1xf32> to vector<2x16xf32>
    %207 = arith.mulf %206, %24 : vector<2x16xf32>
    %208 = vector.extract_strided_slice %195 {offsets = [0, 4], sizes = [2, 1], strides = [1, 1]} : vector<2x16xf32> to vector<2x1xf32>
    %209 = vector.broadcast %208 : vector<2x1xf32> to vector<2x16xf32>
    %210 = arith.mulf %209, %27 : vector<2x16xf32>
    %211 = vector.extract_strided_slice %195 {offsets = [0, 5], sizes = [2, 1], strides = [1, 1]} : vector<2x16xf32> to vector<2x1xf32>
    %212 = vector.broadcast %211 : vector<2x1xf32> to vector<2x16xf32>
    %213 = arith.mulf %212, %30 : vector<2x16xf32>
    %214 = vector.extract_strided_slice %195 {offsets = [0, 6], sizes = [2, 1], strides = [1, 1]} : vector<2x16xf32> to vector<2x1xf32>
    %215 = vector.broadcast %214 : vector<2x1xf32> to vector<2x16xf32>
    %216 = arith.mulf %215, %33 : vector<2x16xf32>
    %217 = vector.extract_strided_slice %195 {offsets = [0, 7], sizes = [2, 1], strides = [1, 1]} : vector<2x16xf32> to vector<2x1xf32>
    %218 = vector.broadcast %217 : vector<2x1xf32> to vector<2x16xf32>
    %219 = arith.mulf %218, %36 : vector<2x16xf32>
    %220 = vector.extract_strided_slice %195 {offsets = [0, 8], sizes = [2, 1], strides = [1, 1]} : vector<2x16xf32> to vector<2x1xf32>
    %221 = vector.broadcast %220 : vector<2x1xf32> to vector<2x16xf32>
    %222 = arith.mulf %221, %39 : vector<2x16xf32>
    %223 = vector.extract_strided_slice %195 {offsets = [0, 9], sizes = [2, 1], strides = [1, 1]} : vector<2x16xf32> to vector<2x1xf32>
    %224 = vector.broadcast %223 : vector<2x1xf32> to vector<2x16xf32>
    %225 = arith.mulf %224, %42 : vector<2x16xf32>
    %226 = vector.extract_strided_slice %195 {offsets = [0, 10], sizes = [2, 1], strides = [1, 1]} : vector<2x16xf32> to vector<2x1xf32>
    %227 = vector.broadcast %226 : vector<2x1xf32> to vector<2x16xf32>
    %228 = arith.mulf %227, %45 : vector<2x16xf32>
    %229 = vector.extract_strided_slice %195 {offsets = [0, 11], sizes = [2, 1], strides = [1, 1]} : vector<2x16xf32> to vector<2x1xf32>
    %230 = vector.broadcast %229 : vector<2x1xf32> to vector<2x16xf32>
    %231 = arith.mulf %230, %48 : vector<2x16xf32>
    %232 = vector.extract_strided_slice %195 {offsets = [0, 12], sizes = [2, 1], strides = [1, 1]} : vector<2x16xf32> to vector<2x1xf32>
    %233 = vector.broadcast %232 : vector<2x1xf32> to vector<2x16xf32>
    %234 = arith.mulf %233, %51 : vector<2x16xf32>
    %235 = vector.extract_strided_slice %195 {offsets = [0, 13], sizes = [2, 1], strides = [1, 1]} : vector<2x16xf32> to vector<2x1xf32>
    %236 = vector.broadcast %235 : vector<2x1xf32> to vector<2x16xf32>
    %237 = arith.mulf %236, %54 : vector<2x16xf32>
    %238 = vector.extract_strided_slice %195 {offsets = [0, 14], sizes = [2, 1], strides = [1, 1]} : vector<2x16xf32> to vector<2x1xf32>
    %239 = vector.broadcast %238 : vector<2x1xf32> to vector<2x16xf32>
    %240 = arith.mulf %239, %57 : vector<2x16xf32>
    %241 = vector.extract_strided_slice %195 {offsets = [0, 15], sizes = [2, 1], strides = [1, 1]} : vector<2x16xf32> to vector<2x1xf32>
    %242 = vector.broadcast %241 : vector<2x1xf32> to vector<2x16xf32>
    %243 = arith.mulf %242, %60 : vector<2x16xf32>
    %244 = vector.extract_strided_slice %12 {offsets = [2, 0, 0], sizes = [1, 2, 16], strides = [1, 1, 1]} : vector<8x2x16xf32> to vector<1x2x16xf32>
    %245 = vector.shape_cast %244 : vector<1x2x16xf32> to vector<2x16xf32>
    %246 = arith.addf %198, %201 : vector<2x16xf32>
    %247 = arith.addf %204, %207 : vector<2x16xf32>
    %248 = arith.addf %210, %213 : vector<2x16xf32>
    %249 = arith.addf %216, %219 : vector<2x16xf32>
    %250 = arith.addf %222, %225 : vector<2x16xf32>
    %251 = arith.addf %228, %231 : vector<2x16xf32>
    %252 = arith.addf %234, %237 : vector<2x16xf32>
    %253 = arith.addf %240, %243 : vector<2x16xf32>
    %254 = arith.addf %246, %247 : vector<2x16xf32>
    %255 = arith.addf %248, %249 : vector<2x16xf32>
    %256 = arith.addf %250, %251 : vector<2x16xf32>
    %257 = arith.addf %252, %253 : vector<2x16xf32>
    %258 = arith.addf %254, %255 : vector<2x16xf32>
    %259 = arith.addf %256, %257 : vector<2x16xf32>
    %260 = arith.addf %258, %259 : vector<2x16xf32>
    %261 = arith.addf %245, %260 : vector<2x16xf32>
    %262 = math.tanh %261 : vector<2x16xf32>
    %263 = vector.extract_strided_slice %262 {offsets = [0, 0], sizes = [2, 1], strides = [1, 1]} : vector<2x16xf32> to vector<2x1xf32>
    %264 = vector.broadcast %263 : vector<2x1xf32> to vector<2x16xf32>
    %265 = arith.mulf %264, %15 : vector<2x16xf32>
    %266 = vector.extract_strided_slice %262 {offsets = [0, 1], sizes = [2, 1], strides = [1, 1]} : vector<2x16xf32> to vector<2x1xf32>
    %267 = vector.broadcast %266 : vector<2x1xf32> to vector<2x16xf32>
    %268 = arith.mulf %267, %18 : vector<2x16xf32>
    %269 = vector.extract_strided_slice %262 {offsets = [0, 2], sizes = [2, 1], strides = [1, 1]} : vector<2x16xf32> to vector<2x1xf32>
    %270 = vector.broadcast %269 : vector<2x1xf32> to vector<2x16xf32>
    %271 = arith.mulf %270, %21 : vector<2x16xf32>
    %272 = vector.extract_strided_slice %262 {offsets = [0, 3], sizes = [2, 1], strides = [1, 1]} : vector<2x16xf32> to vector<2x1xf32>
    %273 = vector.broadcast %272 : vector<2x1xf32> to vector<2x16xf32>
    %274 = arith.mulf %273, %24 : vector<2x16xf32>
    %275 = vector.extract_strided_slice %262 {offsets = [0, 4], sizes = [2, 1], strides = [1, 1]} : vector<2x16xf32> to vector<2x1xf32>
    %276 = vector.broadcast %275 : vector<2x1xf32> to vector<2x16xf32>
    %277 = arith.mulf %276, %27 : vector<2x16xf32>
    %278 = vector.extract_strided_slice %262 {offsets = [0, 5], sizes = [2, 1], strides = [1, 1]} : vector<2x16xf32> to vector<2x1xf32>
    %279 = vector.broadcast %278 : vector<2x1xf32> to vector<2x16xf32>
    %280 = arith.mulf %279, %30 : vector<2x16xf32>
    %281 = vector.extract_strided_slice %262 {offsets = [0, 6], sizes = [2, 1], strides = [1, 1]} : vector<2x16xf32> to vector<2x1xf32>
    %282 = vector.broadcast %281 : vector<2x1xf32> to vector<2x16xf32>
    %283 = arith.mulf %282, %33 : vector<2x16xf32>
    %284 = vector.extract_strided_slice %262 {offsets = [0, 7], sizes = [2, 1], strides = [1, 1]} : vector<2x16xf32> to vector<2x1xf32>
    %285 = vector.broadcast %284 : vector<2x1xf32> to vector<2x16xf32>
    %286 = arith.mulf %285, %36 : vector<2x16xf32>
    %287 = vector.extract_strided_slice %262 {offsets = [0, 8], sizes = [2, 1], strides = [1, 1]} : vector<2x16xf32> to vector<2x1xf32>
    %288 = vector.broadcast %287 : vector<2x1xf32> to vector<2x16xf32>
    %289 = arith.mulf %288, %39 : vector<2x16xf32>
    %290 = vector.extract_strided_slice %262 {offsets = [0, 9], sizes = [2, 1], strides = [1, 1]} : vector<2x16xf32> to vector<2x1xf32>
    %291 = vector.broadcast %290 : vector<2x1xf32> to vector<2x16xf32>
    %292 = arith.mulf %291, %42 : vector<2x16xf32>
    %293 = vector.extract_strided_slice %262 {offsets = [0, 10], sizes = [2, 1], strides = [1, 1]} : vector<2x16xf32> to vector<2x1xf32>
    %294 = vector.broadcast %293 : vector<2x1xf32> to vector<2x16xf32>
    %295 = arith.mulf %294, %45 : vector<2x16xf32>
    %296 = vector.extract_strided_slice %262 {offsets = [0, 11], sizes = [2, 1], strides = [1, 1]} : vector<2x16xf32> to vector<2x1xf32>
    %297 = vector.broadcast %296 : vector<2x1xf32> to vector<2x16xf32>
    %298 = arith.mulf %297, %48 : vector<2x16xf32>
    %299 = vector.extract_strided_slice %262 {offsets = [0, 12], sizes = [2, 1], strides = [1, 1]} : vector<2x16xf32> to vector<2x1xf32>
    %300 = vector.broadcast %299 : vector<2x1xf32> to vector<2x16xf32>
    %301 = arith.mulf %300, %51 : vector<2x16xf32>
    %302 = vector.extract_strided_slice %262 {offsets = [0, 13], sizes = [2, 1], strides = [1, 1]} : vector<2x16xf32> to vector<2x1xf32>
    %303 = vector.broadcast %302 : vector<2x1xf32> to vector<2x16xf32>
    %304 = arith.mulf %303, %54 : vector<2x16xf32>
    %305 = vector.extract_strided_slice %262 {offsets = [0, 14], sizes = [2, 1], strides = [1, 1]} : vector<2x16xf32> to vector<2x1xf32>
    %306 = vector.broadcast %305 : vector<2x1xf32> to vector<2x16xf32>
    %307 = arith.mulf %306, %57 : vector<2x16xf32>
    %308 = vector.extract_strided_slice %262 {offsets = [0, 15], sizes = [2, 1], strides = [1, 1]} : vector<2x16xf32> to vector<2x1xf32>
    %309 = vector.broadcast %308 : vector<2x1xf32> to vector<2x16xf32>
    %310 = arith.mulf %309, %60 : vector<2x16xf32>
    %311 = vector.extract_strided_slice %12 {offsets = [3, 0, 0], sizes = [1, 2, 16], strides = [1, 1, 1]} : vector<8x2x16xf32> to vector<1x2x16xf32>
    %312 = vector.shape_cast %311 : vector<1x2x16xf32> to vector<2x16xf32>
    %313 = arith.addf %265, %268 : vector<2x16xf32>
    %314 = arith.addf %271, %274 : vector<2x16xf32>
    %315 = arith.addf %277, %280 : vector<2x16xf32>
    %316 = arith.addf %283, %286 : vector<2x16xf32>
    %317 = arith.addf %289, %292 : vector<2x16xf32>
    %318 = arith.addf %295, %298 : vector<2x16xf32>
    %319 = arith.addf %301, %304 : vector<2x16xf32>
    %320 = arith.addf %307, %310 : vector<2x16xf32>
    %321 = arith.addf %313, %314 : vector<2x16xf32>
    %322 = arith.addf %315, %316 : vector<2x16xf32>
    %323 = arith.addf %317, %318 : vector<2x16xf32>
    %324 = arith.addf %319, %320 : vector<2x16xf32>
    %325 = arith.addf %321, %322 : vector<2x16xf32>
    %326 = arith.addf %323, %324 : vector<2x16xf32>
    %327 = arith.addf %325, %326 : vector<2x16xf32>
    %328 = arith.addf %312, %327 : vector<2x16xf32>
    %329 = math.tanh %328 : vector<2x16xf32>
    %330 = vector.extract_strided_slice %329 {offsets = [0, 0], sizes = [2, 1], strides = [1, 1]} : vector<2x16xf32> to vector<2x1xf32>
    %331 = vector.broadcast %330 : vector<2x1xf32> to vector<2x16xf32>
    %332 = arith.mulf %331, %15 : vector<2x16xf32>
    %333 = vector.extract_strided_slice %329 {offsets = [0, 1], sizes = [2, 1], strides = [1, 1]} : vector<2x16xf32> to vector<2x1xf32>
    %334 = vector.broadcast %333 : vector<2x1xf32> to vector<2x16xf32>
    %335 = arith.mulf %334, %18 : vector<2x16xf32>
    %336 = vector.extract_strided_slice %329 {offsets = [0, 2], sizes = [2, 1], strides = [1, 1]} : vector<2x16xf32> to vector<2x1xf32>
    %337 = vector.broadcast %336 : vector<2x1xf32> to vector<2x16xf32>
    %338 = arith.mulf %337, %21 : vector<2x16xf32>
    %339 = vector.extract_strided_slice %329 {offsets = [0, 3], sizes = [2, 1], strides = [1, 1]} : vector<2x16xf32> to vector<2x1xf32>
    %340 = vector.broadcast %339 : vector<2x1xf32> to vector<2x16xf32>
    %341 = arith.mulf %340, %24 : vector<2x16xf32>
    %342 = vector.extract_strided_slice %329 {offsets = [0, 4], sizes = [2, 1], strides = [1, 1]} : vector<2x16xf32> to vector<2x1xf32>
    %343 = vector.broadcast %342 : vector<2x1xf32> to vector<2x16xf32>
    %344 = arith.mulf %343, %27 : vector<2x16xf32>
    %345 = vector.extract_strided_slice %329 {offsets = [0, 5], sizes = [2, 1], strides = [1, 1]} : vector<2x16xf32> to vector<2x1xf32>
    %346 = vector.broadcast %345 : vector<2x1xf32> to vector<2x16xf32>
    %347 = arith.mulf %346, %30 : vector<2x16xf32>
    %348 = vector.extract_strided_slice %329 {offsets = [0, 6], sizes = [2, 1], strides = [1, 1]} : vector<2x16xf32> to vector<2x1xf32>
    %349 = vector.broadcast %348 : vector<2x1xf32> to vector<2x16xf32>
    %350 = arith.mulf %349, %33 : vector<2x16xf32>
    %351 = vector.extract_strided_slice %329 {offsets = [0, 7], sizes = [2, 1], strides = [1, 1]} : vector<2x16xf32> to vector<2x1xf32>
    %352 = vector.broadcast %351 : vector<2x1xf32> to vector<2x16xf32>
    %353 = arith.mulf %352, %36 : vector<2x16xf32>
    %354 = vector.extract_strided_slice %329 {offsets = [0, 8], sizes = [2, 1], strides = [1, 1]} : vector<2x16xf32> to vector<2x1xf32>
    %355 = vector.broadcast %354 : vector<2x1xf32> to vector<2x16xf32>
    %356 = arith.mulf %355, %39 : vector<2x16xf32>
    %357 = vector.extract_strided_slice %329 {offsets = [0, 9], sizes = [2, 1], strides = [1, 1]} : vector<2x16xf32> to vector<2x1xf32>
    %358 = vector.broadcast %357 : vector<2x1xf32> to vector<2x16xf32>
    %359 = arith.mulf %358, %42 : vector<2x16xf32>
    %360 = vector.extract_strided_slice %329 {offsets = [0, 10], sizes = [2, 1], strides = [1, 1]} : vector<2x16xf32> to vector<2x1xf32>
    %361 = vector.broadcast %360 : vector<2x1xf32> to vector<2x16xf32>
    %362 = arith.mulf %361, %45 : vector<2x16xf32>
    %363 = vector.extract_strided_slice %329 {offsets = [0, 11], sizes = [2, 1], strides = [1, 1]} : vector<2x16xf32> to vector<2x1xf32>
    %364 = vector.broadcast %363 : vector<2x1xf32> to vector<2x16xf32>
    %365 = arith.mulf %364, %48 : vector<2x16xf32>
    %366 = vector.extract_strided_slice %329 {offsets = [0, 12], sizes = [2, 1], strides = [1, 1]} : vector<2x16xf32> to vector<2x1xf32>
    %367 = vector.broadcast %366 : vector<2x1xf32> to vector<2x16xf32>
    %368 = arith.mulf %367, %51 : vector<2x16xf32>
    %369 = vector.extract_strided_slice %329 {offsets = [0, 13], sizes = [2, 1], strides = [1, 1]} : vector<2x16xf32> to vector<2x1xf32>
    %370 = vector.broadcast %369 : vector<2x1xf32> to vector<2x16xf32>
    %371 = arith.mulf %370, %54 : vector<2x16xf32>
    %372 = vector.extract_strided_slice %329 {offsets = [0, 14], sizes = [2, 1], strides = [1, 1]} : vector<2x16xf32> to vector<2x1xf32>
    %373 = vector.broadcast %372 : vector<2x1xf32> to vector<2x16xf32>
    %374 = arith.mulf %373, %57 : vector<2x16xf32>
    %375 = vector.extract_strided_slice %329 {offsets = [0, 15], sizes = [2, 1], strides = [1, 1]} : vector<2x16xf32> to vector<2x1xf32>
    %376 = vector.broadcast %375 : vector<2x1xf32> to vector<2x16xf32>
    %377 = arith.mulf %376, %60 : vector<2x16xf32>
    %378 = vector.extract_strided_slice %12 {offsets = [4, 0, 0], sizes = [1, 2, 16], strides = [1, 1, 1]} : vector<8x2x16xf32> to vector<1x2x16xf32>
    %379 = vector.shape_cast %378 : vector<1x2x16xf32> to vector<2x16xf32>
    %380 = arith.addf %332, %335 : vector<2x16xf32>
    %381 = arith.addf %338, %341 : vector<2x16xf32>
    %382 = arith.addf %344, %347 : vector<2x16xf32>
    %383 = arith.addf %350, %353 : vector<2x16xf32>
    %384 = arith.addf %356, %359 : vector<2x16xf32>
    %385 = arith.addf %362, %365 : vector<2x16xf32>
    %386 = arith.addf %368, %371 : vector<2x16xf32>
    %387 = arith.addf %374, %377 : vector<2x16xf32>
    %388 = arith.addf %380, %381 : vector<2x16xf32>
    %389 = arith.addf %382, %383 : vector<2x16xf32>
    %390 = arith.addf %384, %385 : vector<2x16xf32>
    %391 = arith.addf %386, %387 : vector<2x16xf32>
    %392 = arith.addf %388, %389 : vector<2x16xf32>
    %393 = arith.addf %390, %391 : vector<2x16xf32>
    %394 = arith.addf %392, %393 : vector<2x16xf32>
    %395 = arith.addf %379, %394 : vector<2x16xf32>
    %396 = math.tanh %395 : vector<2x16xf32>
    %397 = vector.extract_strided_slice %396 {offsets = [0, 0], sizes = [2, 1], strides = [1, 1]} : vector<2x16xf32> to vector<2x1xf32>
    %398 = vector.broadcast %397 : vector<2x1xf32> to vector<2x16xf32>
    %399 = arith.mulf %398, %15 : vector<2x16xf32>
    %400 = vector.extract_strided_slice %396 {offsets = [0, 1], sizes = [2, 1], strides = [1, 1]} : vector<2x16xf32> to vector<2x1xf32>
    %401 = vector.broadcast %400 : vector<2x1xf32> to vector<2x16xf32>
    %402 = arith.mulf %401, %18 : vector<2x16xf32>
    %403 = vector.extract_strided_slice %396 {offsets = [0, 2], sizes = [2, 1], strides = [1, 1]} : vector<2x16xf32> to vector<2x1xf32>
    %404 = vector.broadcast %403 : vector<2x1xf32> to vector<2x16xf32>
    %405 = arith.mulf %404, %21 : vector<2x16xf32>
    %406 = vector.extract_strided_slice %396 {offsets = [0, 3], sizes = [2, 1], strides = [1, 1]} : vector<2x16xf32> to vector<2x1xf32>
    %407 = vector.broadcast %406 : vector<2x1xf32> to vector<2x16xf32>
    %408 = arith.mulf %407, %24 : vector<2x16xf32>
    %409 = vector.extract_strided_slice %396 {offsets = [0, 4], sizes = [2, 1], strides = [1, 1]} : vector<2x16xf32> to vector<2x1xf32>
    %410 = vector.broadcast %409 : vector<2x1xf32> to vector<2x16xf32>
    %411 = arith.mulf %410, %27 : vector<2x16xf32>
    %412 = vector.extract_strided_slice %396 {offsets = [0, 5], sizes = [2, 1], strides = [1, 1]} : vector<2x16xf32> to vector<2x1xf32>
    %413 = vector.broadcast %412 : vector<2x1xf32> to vector<2x16xf32>
    %414 = arith.mulf %413, %30 : vector<2x16xf32>
    %415 = vector.extract_strided_slice %396 {offsets = [0, 6], sizes = [2, 1], strides = [1, 1]} : vector<2x16xf32> to vector<2x1xf32>
    %416 = vector.broadcast %415 : vector<2x1xf32> to vector<2x16xf32>
    %417 = arith.mulf %416, %33 : vector<2x16xf32>
    %418 = vector.extract_strided_slice %396 {offsets = [0, 7], sizes = [2, 1], strides = [1, 1]} : vector<2x16xf32> to vector<2x1xf32>
    %419 = vector.broadcast %418 : vector<2x1xf32> to vector<2x16xf32>
    %420 = arith.mulf %419, %36 : vector<2x16xf32>
    %421 = vector.extract_strided_slice %396 {offsets = [0, 8], sizes = [2, 1], strides = [1, 1]} : vector<2x16xf32> to vector<2x1xf32>
    %422 = vector.broadcast %421 : vector<2x1xf32> to vector<2x16xf32>
    %423 = arith.mulf %422, %39 : vector<2x16xf32>
    %424 = vector.extract_strided_slice %396 {offsets = [0, 9], sizes = [2, 1], strides = [1, 1]} : vector<2x16xf32> to vector<2x1xf32>
    %425 = vector.broadcast %424 : vector<2x1xf32> to vector<2x16xf32>
    %426 = arith.mulf %425, %42 : vector<2x16xf32>
    %427 = vector.extract_strided_slice %396 {offsets = [0, 10], sizes = [2, 1], strides = [1, 1]} : vector<2x16xf32> to vector<2x1xf32>
    %428 = vector.broadcast %427 : vector<2x1xf32> to vector<2x16xf32>
    %429 = arith.mulf %428, %45 : vector<2x16xf32>
    %430 = vector.extract_strided_slice %396 {offsets = [0, 11], sizes = [2, 1], strides = [1, 1]} : vector<2x16xf32> to vector<2x1xf32>
    %431 = vector.broadcast %430 : vector<2x1xf32> to vector<2x16xf32>
    %432 = arith.mulf %431, %48 : vector<2x16xf32>
    %433 = vector.extract_strided_slice %396 {offsets = [0, 12], sizes = [2, 1], strides = [1, 1]} : vector<2x16xf32> to vector<2x1xf32>
    %434 = vector.broadcast %433 : vector<2x1xf32> to vector<2x16xf32>
    %435 = arith.mulf %434, %51 : vector<2x16xf32>
    %436 = vector.extract_strided_slice %396 {offsets = [0, 13], sizes = [2, 1], strides = [1, 1]} : vector<2x16xf32> to vector<2x1xf32>
    %437 = vector.broadcast %436 : vector<2x1xf32> to vector<2x16xf32>
    %438 = arith.mulf %437, %54 : vector<2x16xf32>
    %439 = vector.extract_strided_slice %396 {offsets = [0, 14], sizes = [2, 1], strides = [1, 1]} : vector<2x16xf32> to vector<2x1xf32>
    %440 = vector.broadcast %439 : vector<2x1xf32> to vector<2x16xf32>
    %441 = arith.mulf %440, %57 : vector<2x16xf32>
    %442 = vector.extract_strided_slice %396 {offsets = [0, 15], sizes = [2, 1], strides = [1, 1]} : vector<2x16xf32> to vector<2x1xf32>
    %443 = vector.broadcast %442 : vector<2x1xf32> to vector<2x16xf32>
    %444 = arith.mulf %443, %60 : vector<2x16xf32>
    %445 = vector.extract_strided_slice %12 {offsets = [5, 0, 0], sizes = [1, 2, 16], strides = [1, 1, 1]} : vector<8x2x16xf32> to vector<1x2x16xf32>
    %446 = vector.shape_cast %445 : vector<1x2x16xf32> to vector<2x16xf32>
    %447 = arith.addf %399, %402 : vector<2x16xf32>
    %448 = arith.addf %405, %408 : vector<2x16xf32>
    %449 = arith.addf %411, %414 : vector<2x16xf32>
    %450 = arith.addf %417, %420 : vector<2x16xf32>
    %451 = arith.addf %423, %426 : vector<2x16xf32>
    %452 = arith.addf %429, %432 : vector<2x16xf32>
    %453 = arith.addf %435, %438 : vector<2x16xf32>
    %454 = arith.addf %441, %444 : vector<2x16xf32>
    %455 = arith.addf %447, %448 : vector<2x16xf32>
    %456 = arith.addf %449, %450 : vector<2x16xf32>
    %457 = arith.addf %451, %452 : vector<2x16xf32>
    %458 = arith.addf %453, %454 : vector<2x16xf32>
    %459 = arith.addf %455, %456 : vector<2x16xf32>
    %460 = arith.addf %457, %458 : vector<2x16xf32>
    %461 = arith.addf %459, %460 : vector<2x16xf32>
    %462 = arith.addf %446, %461 : vector<2x16xf32>
    %463 = math.tanh %462 : vector<2x16xf32>
    %464 = vector.extract_strided_slice %463 {offsets = [0, 0], sizes = [2, 1], strides = [1, 1]} : vector<2x16xf32> to vector<2x1xf32>
    %465 = vector.broadcast %464 : vector<2x1xf32> to vector<2x16xf32>
    %466 = arith.mulf %465, %15 : vector<2x16xf32>
    %467 = vector.extract_strided_slice %463 {offsets = [0, 1], sizes = [2, 1], strides = [1, 1]} : vector<2x16xf32> to vector<2x1xf32>
    %468 = vector.broadcast %467 : vector<2x1xf32> to vector<2x16xf32>
    %469 = arith.mulf %468, %18 : vector<2x16xf32>
    %470 = vector.extract_strided_slice %463 {offsets = [0, 2], sizes = [2, 1], strides = [1, 1]} : vector<2x16xf32> to vector<2x1xf32>
    %471 = vector.broadcast %470 : vector<2x1xf32> to vector<2x16xf32>
    %472 = arith.mulf %471, %21 : vector<2x16xf32>
    %473 = vector.extract_strided_slice %463 {offsets = [0, 3], sizes = [2, 1], strides = [1, 1]} : vector<2x16xf32> to vector<2x1xf32>
    %474 = vector.broadcast %473 : vector<2x1xf32> to vector<2x16xf32>
    %475 = arith.mulf %474, %24 : vector<2x16xf32>
    %476 = vector.extract_strided_slice %463 {offsets = [0, 4], sizes = [2, 1], strides = [1, 1]} : vector<2x16xf32> to vector<2x1xf32>
    %477 = vector.broadcast %476 : vector<2x1xf32> to vector<2x16xf32>
    %478 = arith.mulf %477, %27 : vector<2x16xf32>
    %479 = vector.extract_strided_slice %463 {offsets = [0, 5], sizes = [2, 1], strides = [1, 1]} : vector<2x16xf32> to vector<2x1xf32>
    %480 = vector.broadcast %479 : vector<2x1xf32> to vector<2x16xf32>
    %481 = arith.mulf %480, %30 : vector<2x16xf32>
    %482 = vector.extract_strided_slice %463 {offsets = [0, 6], sizes = [2, 1], strides = [1, 1]} : vector<2x16xf32> to vector<2x1xf32>
    %483 = vector.broadcast %482 : vector<2x1xf32> to vector<2x16xf32>
    %484 = arith.mulf %483, %33 : vector<2x16xf32>
    %485 = vector.extract_strided_slice %463 {offsets = [0, 7], sizes = [2, 1], strides = [1, 1]} : vector<2x16xf32> to vector<2x1xf32>
    %486 = vector.broadcast %485 : vector<2x1xf32> to vector<2x16xf32>
    %487 = arith.mulf %486, %36 : vector<2x16xf32>
    %488 = vector.extract_strided_slice %463 {offsets = [0, 8], sizes = [2, 1], strides = [1, 1]} : vector<2x16xf32> to vector<2x1xf32>
    %489 = vector.broadcast %488 : vector<2x1xf32> to vector<2x16xf32>
    %490 = arith.mulf %489, %39 : vector<2x16xf32>
    %491 = vector.extract_strided_slice %463 {offsets = [0, 9], sizes = [2, 1], strides = [1, 1]} : vector<2x16xf32> to vector<2x1xf32>
    %492 = vector.broadcast %491 : vector<2x1xf32> to vector<2x16xf32>
    %493 = arith.mulf %492, %42 : vector<2x16xf32>
    %494 = vector.extract_strided_slice %463 {offsets = [0, 10], sizes = [2, 1], strides = [1, 1]} : vector<2x16xf32> to vector<2x1xf32>
    %495 = vector.broadcast %494 : vector<2x1xf32> to vector<2x16xf32>
    %496 = arith.mulf %495, %45 : vector<2x16xf32>
    %497 = vector.extract_strided_slice %463 {offsets = [0, 11], sizes = [2, 1], strides = [1, 1]} : vector<2x16xf32> to vector<2x1xf32>
    %498 = vector.broadcast %497 : vector<2x1xf32> to vector<2x16xf32>
    %499 = arith.mulf %498, %48 : vector<2x16xf32>
    %500 = vector.extract_strided_slice %463 {offsets = [0, 12], sizes = [2, 1], strides = [1, 1]} : vector<2x16xf32> to vector<2x1xf32>
    %501 = vector.broadcast %500 : vector<2x1xf32> to vector<2x16xf32>
    %502 = arith.mulf %501, %51 : vector<2x16xf32>
    %503 = vector.extract_strided_slice %463 {offsets = [0, 13], sizes = [2, 1], strides = [1, 1]} : vector<2x16xf32> to vector<2x1xf32>
    %504 = vector.broadcast %503 : vector<2x1xf32> to vector<2x16xf32>
    %505 = arith.mulf %504, %54 : vector<2x16xf32>
    %506 = vector.extract_strided_slice %463 {offsets = [0, 14], sizes = [2, 1], strides = [1, 1]} : vector<2x16xf32> to vector<2x1xf32>
    %507 = vector.broadcast %506 : vector<2x1xf32> to vector<2x16xf32>
    %508 = arith.mulf %507, %57 : vector<2x16xf32>
    %509 = vector.extract_strided_slice %463 {offsets = [0, 15], sizes = [2, 1], strides = [1, 1]} : vector<2x16xf32> to vector<2x1xf32>
    %510 = vector.broadcast %509 : vector<2x1xf32> to vector<2x16xf32>
    %511 = arith.mulf %510, %60 : vector<2x16xf32>
    %512 = vector.extract_strided_slice %12 {offsets = [6, 0, 0], sizes = [1, 2, 16], strides = [1, 1, 1]} : vector<8x2x16xf32> to vector<1x2x16xf32>
    %513 = vector.shape_cast %512 : vector<1x2x16xf32> to vector<2x16xf32>
    %514 = arith.addf %466, %469 : vector<2x16xf32>
    %515 = arith.addf %472, %475 : vector<2x16xf32>
    %516 = arith.addf %478, %481 : vector<2x16xf32>
    %517 = arith.addf %484, %487 : vector<2x16xf32>
    %518 = arith.addf %490, %493 : vector<2x16xf32>
    %519 = arith.addf %496, %499 : vector<2x16xf32>
    %520 = arith.addf %502, %505 : vector<2x16xf32>
    %521 = arith.addf %508, %511 : vector<2x16xf32>
    %522 = arith.addf %514, %515 : vector<2x16xf32>
    %523 = arith.addf %516, %517 : vector<2x16xf32>
    %524 = arith.addf %518, %519 : vector<2x16xf32>
    %525 = arith.addf %520, %521 : vector<2x16xf32>
    %526 = arith.addf %522, %523 : vector<2x16xf32>
    %527 = arith.addf %524, %525 : vector<2x16xf32>
    %528 = arith.addf %526, %527 : vector<2x16xf32>
    %529 = arith.addf %513, %528 : vector<2x16xf32>
    %530 = math.tanh %529 : vector<2x16xf32>
    %531 = vector.extract_strided_slice %530 {offsets = [0, 0], sizes = [2, 1], strides = [1, 1]} : vector<2x16xf32> to vector<2x1xf32>
    %532 = vector.broadcast %531 : vector<2x1xf32> to vector<2x16xf32>
    %533 = arith.mulf %532, %15 : vector<2x16xf32>
    %534 = vector.extract_strided_slice %530 {offsets = [0, 1], sizes = [2, 1], strides = [1, 1]} : vector<2x16xf32> to vector<2x1xf32>
    %535 = vector.broadcast %534 : vector<2x1xf32> to vector<2x16xf32>
    %536 = arith.mulf %535, %18 : vector<2x16xf32>
    %537 = vector.extract_strided_slice %530 {offsets = [0, 2], sizes = [2, 1], strides = [1, 1]} : vector<2x16xf32> to vector<2x1xf32>
    %538 = vector.broadcast %537 : vector<2x1xf32> to vector<2x16xf32>
    %539 = arith.mulf %538, %21 : vector<2x16xf32>
    %540 = vector.extract_strided_slice %530 {offsets = [0, 3], sizes = [2, 1], strides = [1, 1]} : vector<2x16xf32> to vector<2x1xf32>
    %541 = vector.broadcast %540 : vector<2x1xf32> to vector<2x16xf32>
    %542 = arith.mulf %541, %24 : vector<2x16xf32>
    %543 = vector.extract_strided_slice %530 {offsets = [0, 4], sizes = [2, 1], strides = [1, 1]} : vector<2x16xf32> to vector<2x1xf32>
    %544 = vector.broadcast %543 : vector<2x1xf32> to vector<2x16xf32>
    %545 = arith.mulf %544, %27 : vector<2x16xf32>
    %546 = vector.extract_strided_slice %530 {offsets = [0, 5], sizes = [2, 1], strides = [1, 1]} : vector<2x16xf32> to vector<2x1xf32>
    %547 = vector.broadcast %546 : vector<2x1xf32> to vector<2x16xf32>
    %548 = arith.mulf %547, %30 : vector<2x16xf32>
    %549 = vector.extract_strided_slice %530 {offsets = [0, 6], sizes = [2, 1], strides = [1, 1]} : vector<2x16xf32> to vector<2x1xf32>
    %550 = vector.broadcast %549 : vector<2x1xf32> to vector<2x16xf32>
    %551 = arith.mulf %550, %33 : vector<2x16xf32>
    %552 = vector.extract_strided_slice %530 {offsets = [0, 7], sizes = [2, 1], strides = [1, 1]} : vector<2x16xf32> to vector<2x1xf32>
    %553 = vector.broadcast %552 : vector<2x1xf32> to vector<2x16xf32>
    %554 = arith.mulf %553, %36 : vector<2x16xf32>
    %555 = vector.extract_strided_slice %530 {offsets = [0, 8], sizes = [2, 1], strides = [1, 1]} : vector<2x16xf32> to vector<2x1xf32>
    %556 = vector.broadcast %555 : vector<2x1xf32> to vector<2x16xf32>
    %557 = arith.mulf %556, %39 : vector<2x16xf32>
    %558 = vector.extract_strided_slice %530 {offsets = [0, 9], sizes = [2, 1], strides = [1, 1]} : vector<2x16xf32> to vector<2x1xf32>
    %559 = vector.broadcast %558 : vector<2x1xf32> to vector<2x16xf32>
    %560 = arith.mulf %559, %42 : vector<2x16xf32>
    %561 = vector.extract_strided_slice %530 {offsets = [0, 10], sizes = [2, 1], strides = [1, 1]} : vector<2x16xf32> to vector<2x1xf32>
    %562 = vector.broadcast %561 : vector<2x1xf32> to vector<2x16xf32>
    %563 = arith.mulf %562, %45 : vector<2x16xf32>
    %564 = vector.extract_strided_slice %530 {offsets = [0, 11], sizes = [2, 1], strides = [1, 1]} : vector<2x16xf32> to vector<2x1xf32>
    %565 = vector.broadcast %564 : vector<2x1xf32> to vector<2x16xf32>
    %566 = arith.mulf %565, %48 : vector<2x16xf32>
    %567 = vector.extract_strided_slice %530 {offsets = [0, 12], sizes = [2, 1], strides = [1, 1]} : vector<2x16xf32> to vector<2x1xf32>
    %568 = vector.broadcast %567 : vector<2x1xf32> to vector<2x16xf32>
    %569 = arith.mulf %568, %51 : vector<2x16xf32>
    %570 = vector.extract_strided_slice %530 {offsets = [0, 13], sizes = [2, 1], strides = [1, 1]} : vector<2x16xf32> to vector<2x1xf32>
    %571 = vector.broadcast %570 : vector<2x1xf32> to vector<2x16xf32>
    %572 = arith.mulf %571, %54 : vector<2x16xf32>
    %573 = vector.extract_strided_slice %530 {offsets = [0, 14], sizes = [2, 1], strides = [1, 1]} : vector<2x16xf32> to vector<2x1xf32>
    %574 = vector.broadcast %573 : vector<2x1xf32> to vector<2x16xf32>
    %575 = arith.mulf %574, %57 : vector<2x16xf32>
    %576 = vector.extract_strided_slice %530 {offsets = [0, 15], sizes = [2, 1], strides = [1, 1]} : vector<2x16xf32> to vector<2x1xf32>
    %577 = vector.broadcast %576 : vector<2x1xf32> to vector<2x16xf32>
    %578 = arith.mulf %577, %60 : vector<2x16xf32>
    %579 = vector.extract_strided_slice %12 {offsets = [7, 0, 0], sizes = [1, 2, 16], strides = [1, 1, 1]} : vector<8x2x16xf32> to vector<1x2x16xf32>
    %580 = vector.shape_cast %579 : vector<1x2x16xf32> to vector<2x16xf32>
    %581 = arith.addf %533, %536 : vector<2x16xf32>
    %582 = arith.addf %539, %542 : vector<2x16xf32>
    %583 = arith.addf %545, %548 : vector<2x16xf32>
    %584 = arith.addf %551, %554 : vector<2x16xf32>
    %585 = arith.addf %557, %560 : vector<2x16xf32>
    %586 = arith.addf %563, %566 : vector<2x16xf32>
    %587 = arith.addf %569, %572 : vector<2x16xf32>
    %588 = arith.addf %575, %578 : vector<2x16xf32>
    %589 = arith.addf %581, %582 : vector<2x16xf32>
    %590 = arith.addf %583, %584 : vector<2x16xf32>
    %591 = arith.addf %585, %586 : vector<2x16xf32>
    %592 = arith.addf %587, %588 : vector<2x16xf32>
    %593 = arith.addf %589, %590 : vector<2x16xf32>
    %594 = arith.addf %591, %592 : vector<2x16xf32>
    %595 = arith.addf %593, %594 : vector<2x16xf32>
    %596 = arith.addf %580, %595 : vector<2x16xf32>
    %597 = math.tanh %596 : vector<2x16xf32>
    %598 = vector.broadcast %3 : vector<1x16xf32> to vector<2x16xf32>
    %599 = arith.mulf %597, %598 : vector<2x16xf32>
    %cst_8 = arith.constant dense<0.000000e+00> : vector<2xf32>
    %600 = vector.multi_reduction <add>, %599, %cst_8 [1] : vector<2x16xf32> to vector<2xf32>
    %601 = vector.shape_cast %600 : vector<2xf32> to vector<2x1xf32>
    %602 = vector.broadcast %4 : vector<1x1xf32> to vector<2x1xf32>
    %603 = arith.addf %601, %602 : vector<2x1xf32>
    %c0_9 = arith.constant 0 : index
    %c0_10 = arith.constant 0 : index
    %604 = vector.load %arg2[%c0_9, %c0_10] : memref<2x1xf32, #tpu.memory_space<vmem>>, vector<2x1xf32>
    tpu.vector_store %arg2[%c0_9, %c0_10], %603 {strides = array<i32>} : memref<2x1xf32, #tpu.memory_space<vmem>>, vector<2x1xf32>,
    return
  }
}

</mosaic_0001>

<llo_original>
// kernel: tpu_custom_call.1
$region0: #{tpu_custom_call.1}
  #allocation0 [shape = 'u32[]', space=smem, size = 0x4, offset = 0x4, fixed_abs, tag = 'smem constant byte address 0x4 - core index']
  #allocation1 [shape = 'u32[72,128]{1,0:T(1,128)}', space=vmem, size = 0x9000, scoped, tag = 'internal scratch']
  %s0 = inlined_call_operand.vmem [shape: f32[8,2,1], index: 0, kind: input, shape index: {}]
  %s1 = inlined_call_operand.vmem [shape: f32[20,16], index: 1, kind: input, shape index: {}]
  %s2 = inlined_call_operand.vmem [shape: f32[2,1], index: 2, kind: output, shape index: {}]
  %s3 = sld [smem:[#allocation0]]
  $region18: #{tpu_custom_call.1} parent=0
    _
  %s5 = ssub.s32 1, %s3
  %s6 = scalar_select 0, %s5, %s3
  // Predicated region
  $region2: #{tpu_custom_call.1} parent=0 // pred_check
    _
  $region3: #{tpu_custom_call.1} parent=0 // pred_check_branch
    %8 = sbr.rel (0) target = $region5
  $region4: #{tpu_custom_call.1} parent=0 // pred_region
    _
  $region5: #{tpu_custom_call.1} parent=0 // pred_fallthru
    _
  // Predicated region
  $region6: #{tpu_custom_call.1} parent=0 // pred_check
    _
  $region7: #{tpu_custom_call.1} parent=0 // pred_check_branch
    %10 = sbr.rel (0) target = $region9
  $region8: #{tpu_custom_call.1} parent=0 // pred_region
    _
  $region9: #{tpu_custom_call.1} parent=0 // pred_fallthru
    _
  %v11 = vld [vmem:[%s1] sm:$0xff]
  %v12 = vld [vmem:[%s1 + $0x8] sm:$0xff]
  %v13 = vld [vmem:[%s1 + $0x10] sm:$0x1]
  %v14 = vld [vmem:[%s1 + $0x11] sm:$0x1]
  %v15 = vld [vmem:[%s1 + $0x12] sm:$0x1]
  %v16 = vld [vmem:[%s1 + $0x13] sm:$0x1]
  %v17 = vld [vmem:[%s0] sm:$0x3]
  %v18 = vld [vmem:[%s0 + $0x2] sm:$0x3]
  %v19 = vld [vmem:[%s0 + $0x4] sm:$0x3]
  %v20 = vld [vmem:[%s0 + $0x6] sm:$0x3]
  %v21 = vld [vmem:[%s0 + $0x8] sm:$0x3]
  %v22 = vld [vmem:[%s0 + $0xa] sm:$0x3]
  %v23 = vld [vmem:[%s0 + $0xc] sm:$0x3]
  %v24 = vld [vmem:[%s0 + $0xe] sm:$0x3]
  %26 = vset.pattern.permute.xlu0 0
  %27 = vperm.xlu0 %26, %v17
  %v28 = vpop.permute.xlu0 %27
  %31 = vset.pattern.permute.xlu0 0
  %32 = vperm.xlu0 %31, %v18
  %v33 = vpop.permute.xlu0 %32
  %36 = vset.pattern.permute.xlu0 0
  %37 = vperm.xlu0 %36, %v19
  %v38 = vpop.permute.xlu0 %37
  %41 = vset.pattern.permute.xlu0 0
  %42 = vperm.xlu0 %41, %v20
  %v43 = vpop.permute.xlu0 %42
  %46 = vset.pattern.permute.xlu0 0
  %47 = vperm.xlu0 %46, %v21
  %v48 = vpop.permute.xlu0 %47
  %51 = vset.pattern.permute.xlu0 0
  %52 = vperm.xlu0 %51, %v22
  %v53 = vpop.permute.xlu0 %52
  %56 = vset.pattern.permute.xlu0 0
  %57 = vperm.xlu0 %56, %v23
  %v58 = vpop.permute.xlu0 %57
  %61 = vset.pattern.permute.xlu0 0
  %62 = vperm.xlu0 %61, %v24
  %v63 = vpop.permute.xlu0 %62
  %v65 = vperm.slane %v13, 0
  %v66 = vmul.f32 %v28, %v65
  %v67 = vmul.f32 %v33, %v65
  %v68 = vmul.f32 %v38, %v65
  %v69 = vmul.f32 %v43, %v65
  %v70 = vmul.f32 %v48, %v65
  %v71 = vmul.f32 %v53, %v65
  %v72 = vmul.f32 %v58, %v65
  %v73 = vmul.f32 %v63, %v65
  %v74 = vperm.slane %v14, 0
  %v75 = vadd.f32 %v66, %v74
  %v76 = vadd.f32 %v67, %v74
  %v77 = vadd.f32 %v68, %v74
  %v78 = vadd.f32 %v69, %v74
  %v79 = vadd.f32 %v70, %v74
  %v80 = vadd.f32 %v71, %v74
  %v81 = vadd.f32 %v72, %v74
  %v82 = vadd.f32 %v73, %v74
  %v83 = vperm.slane %v11, 0
  %v84 = vperm.slane %v11, 1
  %v85 = vperm.slane %v11, 2
  %v86 = vperm.slane %v11, 3
  %v87 = vperm.slane %v11, 4
  %v88 = vperm.slane %v11, 5
  %v89 = vperm.slane %v11, 6
  %v90 = vperm.slane %v11, 7
  %v91 = vperm.slane %v12, 0
  %v92 = vperm.slane %v12, 1
  %v93 = vperm.slane %v12, 2
  %v94 = vperm.slane %v12, 3
  %v95 = vperm.slane %v12, 4
  %v96 = vperm.slane %v12, 5
  %v97 = vperm.slane %v12, 6
  %v98 = vperm.slane %v12, 7
  %v99 = vmul.f32 %v83, 0.0
  %v100 = vmul.f32 %v84, 0.0
  %v101 = vmul.f32 %v85, 0.0
  %v102 = vmul.f32 %v86, 0.0
  %v103 = vmul.f32 %v87, 0.0
  %v104 = vmul.f32 %v88, 0.0
  %v105 = vmul.f32 %v89, 0.0
  %v106 = vmul.f32 %v90, 0.0
  %v107 = vmul.f32 %v91, 0.0
  %v108 = vmul.f32 %v92, 0.0
  %v109 = vmul.f32 %v93, 0.0
  %v110 = vmul.f32 %v94, 0.0
  %v111 = vmul.f32 %v95, 0.0
  %v112 = vmul.f32 %v96, 0.0
  %v113 = vmul.f32 %v97, 0.0
  %v114 = vmul.f32 %v98, 0.0
  %v115 = vadd.f32 %v99, %v100
  %v116 = vadd.f32 %v101, %v102
  %v117 = vadd.f32 %v103, %v104
  %v118 = vadd.f32 %v105, %v106
  %v119 = vadd.f32 %v107, %v108
  %v120 = vadd.f32 %v109, %v110
  %v121 = vadd.f32 %v111, %v112
  %v122 = vadd.f32 %v113, %v114
  %v123 = vadd.f32 %v115, %v116
  %v124 = vadd.f32 %v117, %v118
  %v125 = vadd.f32 %v119, %v120
  %v126 = vadd.f32 %v121, %v122
  %v127 = vadd.f32 %v123, %v124
  %v128 = vadd.f32 %v125, %v126
  %v129 = vadd.f32 %v127, %v128
  %v130 = vadd.f32 %v75, %v129
  %v131 = vtanh.pop %v130
  %133 = vset.pattern.permute.xlu0 0
  %134 = vperm.xlu0 %133, %v131
  %v135 = vpop.permute.xlu0 %134
  %v137 = vmul.f32 %v135, %v83
  %138 = vset.pattern.permute.xlu0 1
  %139 = vperm.xlu0 %138, %v131
  %v140 = vpop.permute.xlu0 %139
  %v142 = vmul.f32 %v140, %v84
  %143 = vset.pattern.permute.xlu0 2
  %144 = vperm.xlu0 %143, %v131
  %v145 = vpop.permute.xlu0 %144
  %v147 = vmul.f32 %v145, %v85
  %148 = vset.pattern.permute.xlu0 3
  %149 = vperm.xlu0 %148, %v131
  %v150 = vpop.permute.xlu0 %149
  %v152 = vmul.f32 %v150, %v86
  %153 = vset.pattern.permute.xlu0 4
  %154 = vperm.xlu0 %153, %v131
  %v155 = vpop.permute.xlu0 %154
  %v157 = vmul.f32 %v155, %v87
  %158 = vset.pattern.permute.xlu0 5
  %159 = vperm.xlu0 %158, %v131
  %v160 = vpop.permute.xlu0 %159
  %v162 = vmul.f32 %v160, %v88
  %163 = vset.pattern.permute.xlu0 6
  %164 = vperm.xlu0 %163, %v131
  %v165 = vpop.permute.xlu0 %164
  %v167 = vmul.f32 %v165, %v89
  %168 = vset.pattern.permute.xlu0 7
  %169 = vperm.xlu0 %168, %v131
  %v170 = vpop.permute.xlu0 %169
  %v172 = vmul.f32 %v170, %v90
  %173 = vset.pattern.permute.xlu0 8
  %174 = vperm.xlu0 %173, %v131
  %v175 = vpop.permute.xlu0 %174
  %v177 = vmul.f32 %v175, %v91
  %178 = vset.pattern.permute.xlu0 9
  %179 = vperm.xlu0 %178, %v131
  %v180 = vpop.permute.xlu0 %179
  %v182 = vmul.f32 %v180, %v92
  %183 = vset.pattern.permute.xlu0 10
  %184 = vperm.xlu0 %183, %v131
  %v185 = vpop.permute.xlu0 %184
  %v187 = vmul.f32 %v185, %v93
  %188 = vset.pattern.permute.xlu0 11
  %189 = vperm.xlu0 %188, %v131
  %v190 = vpop.permute.xlu0 %189
  %v192 = vmul.f32 %v190, %v94
  %193 = vset.pattern.permute.xlu0 12
  %194 = vperm.xlu0 %193, %v131
  %v195 = vpop.permute.xlu0 %194
  %v197 = vmul.f32 %v195, %v95
  %198 = vset.pattern.permute.xlu0 13
  %199 = vperm.xlu0 %198, %v131
  %v200 = vpop.permute.xlu0 %199
  %v202 = vmul.f32 %v200, %v96
  %203 = vset.pattern.permute.xlu0 14
  %204 = vperm.xlu0 %203, %v131
  %v205 = vpop.permute.xlu0 %204
  %v207 = vmul.f32 %v205, %v97
  %208 = vset.pattern.permute.xlu0 15
  %209 = vperm.xlu0 %208, %v131
  %v210 = vpop.permute.xlu0 %209
  %v212 = vmul.f32 %v210, %v98
  %v213 = vadd.f32 %v137, %v142
  %v214 = vadd.f32 %v147, %v152
  %v215 = vadd.f32 %v157, %v162
  %v216 = vadd.f32 %v167, %v172
  %v217 = vadd.f32 %v177, %v182
  %v218 = vadd.f32 %v187, %v192
  %v219 = vadd.f32 %v197, %v202
  %v220 = vadd.f32 %v207, %v212
  %v221 = vadd.f32 %v213, %v214
  %v222 = vadd.f32 %v215, %v216
  %v223 = vadd.f32 %v217, %v218
  %v224 = vadd.f32 %v219, %v220
  %v225 = vadd.f32 %v221, %v222
  %v226 = vadd.f32 %v223, %v224
  %v227 = vadd.f32 %v225, %v226
  %v228 = vadd.f32 %v76, %v227
  %v229 = vtanh.pop %v228
  %231 = vset.pattern.permute.xlu0 0
  %232 = vperm.xlu0 %231, %v229
  %v233 = vpop.permute.xlu0 %232
  %v235 = vmul.f32 %v233, %v83
  %236 = vset.pattern.permute.xlu0 1
  %237 = vperm.xlu0 %236, %v229
  %v238 = vpop.permute.xlu0 %237
  %v240 = vmul.f32 %v238, %v84
  %241 = vset.pattern.permute.xlu0 2
  %242 = vperm.xlu0 %241, %v229
  %v243 = vpop.permute.xlu0 %242
  %v245 = vmul.f32 %v243, %v85
  %246 = vset.pattern.permute.xlu0 3
  %247 = vperm.xlu0 %246, %v229
  %v248 = vpop.permute.xlu0 %247
  %v250 = vmul.f32 %v248, %v86
  %251 = vset.pattern.permute.xlu0 4
  %252 = vperm.xlu0 %251, %v229
  %v253 = vpop.permute.xlu0 %252
  %v255 = vmul.f32 %v253, %v87
  %256 = vset.pattern.permute.xlu0 5
  %257 = vperm.xlu0 %256, %v229
  %v258 = vpop.permute.xlu0 %257
  %v260 = vmul.f32 %v258, %v88
  %261 = vset.pattern.permute.xlu0 6
  %262 = vperm.xlu0 %261, %v229
  %v263 = vpop.permute.xlu0 %262
  %v265 = vmul.f32 %v263, %v89
  %266 = vset.pattern.permute.xlu0 7
  %267 = vperm.xlu0 %266, %v229
  %v268 = vpop.permute.xlu0 %267
  %v270 = vmul.f32 %v268, %v90
  %271 = vset.pattern.permute.xlu0 8
  %272 = vperm.xlu0 %271, %v229
  %v273 = vpop.permute.xlu0 %272
  %v275 = vmul.f32 %v273, %v91
  %276 = vset.pattern.permute.xlu0 9
  %277 = vperm.xlu0 %276, %v229
  %v278 = vpop.permute.xlu0 %277
  %v280 = vmul.f32 %v278, %v92
  %281 = vset.pattern.permute.xlu0 10
  %282 = vperm.xlu0 %281, %v229
  %v283 = vpop.permute.xlu0 %282
  %v285 = vmul.f32 %v283, %v93
  %286 = vset.pattern.permute.xlu0 11
  %287 = vperm.xlu0 %286, %v229
  %v288 = vpop.permute.xlu0 %287
  %v290 = vmul.f32 %v288, %v94
  %291 = vset.pattern.permute.xlu0 12
  %292 = vperm.xlu0 %291, %v229
  %v293 = vpop.permute.xlu0 %292
  %v295 = vmul.f32 %v293, %v95
  %296 = vset.pattern.permute.xlu0 13
  %297 = vperm.xlu0 %296, %v229
  %v298 = vpop.permute.xlu0 %297
  %v300 = vmul.f32 %v298, %v96
  %301 = vset.pattern.permute.xlu0 14
  %302 = vperm.xlu0 %301, %v229
  %v303 = vpop.permute.xlu0 %302
  %v305 = vmul.f32 %v303, %v97
  %306 = vset.pattern.permute.xlu0 15
  %307 = vperm.xlu0 %306, %v229
  %v308 = vpop.permute.xlu0 %307
  %v310 = vmul.f32 %v308, %v98
  %v311 = vadd.f32 %v235, %v240
  %v312 = vadd.f32 %v245, %v250
  %v313 = vadd.f32 %v255, %v260
  %v314 = vadd.f32 %v265, %v270
  %v315 = vadd.f32 %v275, %v280
  %v316 = vadd.f32 %v285, %v290
  %v317 = vadd.f32 %v295, %v300
  %v318 = vadd.f32 %v305, %v310
  %v319 = vadd.f32 %v311, %v312
  %v320 = vadd.f32 %v313, %v314
  %v321 = vadd.f32 %v315, %v316
  %v322 = vadd.f32 %v317, %v318
  %v323 = vadd.f32 %v319, %v320
  %v324 = vadd.f32 %v321, %v322
  %v325 = vadd.f32 %v323, %v324
  %v326 = vadd.f32 %v77, %v325
  %v327 = vtanh.pop %v326
  %329 = vset.pattern.permute.xlu0 0
  %330 = vperm.xlu0 %329, %v327
  %v331 = vpop.permute.xlu0 %330
  %v333 = vmul.f32 %v331, %v83
  %334 = vset.pattern.permute.xlu0 1
  %335 = vperm.xlu0 %334, %v327
  %v336 = vpop.permute.xlu0 %335
  %v338 = vmul.f32 %v336, %v84
  %339 = vset.pattern.permute.xlu0 2
  %340 = vperm.xlu0 %339, %v327
  %v341 = vpop.permute.xlu0 %340
  %v343 = vmul.f32 %v341, %v85
  %344 = vset.pattern.permute.xlu0 3
  %345 = vperm.xlu0 %344, %v327
  %v346 = vpop.permute.xlu0 %345
  %v348 = vmul.f32 %v346, %v86
  %349 = vset.pattern.permute.xlu0 4
  %350 = vperm.xlu0 %349, %v327
  %v351 = vpop.permute.xlu0 %350
  %v353 = vmul.f32 %v351, %v87
  %354 = vset.pattern.permute.xlu0 5
  %355 = vperm.xlu0 %354, %v327
  %v356 = vpop.permute.xlu0 %355
  %v358 = vmul.f32 %v356, %v88
  %359 = vset.pattern.permute.xlu0 6
  %360 = vperm.xlu0 %359, %v327
  %v361 = vpop.permute.xlu0 %360
  %v363 = vmul.f32 %v361, %v89
  %364 = vset.pattern.permute.xlu0 7
  %365 = vperm.xlu0 %364, %v327
  %v366 = vpop.permute.xlu0 %365
  %v368 = vmul.f32 %v366, %v90
  %369 = vset.pattern.permute.xlu0 8
  %370 = vperm.xlu0 %369, %v327
  %v371 = vpop.permute.xlu0 %370
  %v373 = vmul.f32 %v371, %v91
  %374 = vset.pattern.permute.xlu0 9
  %375 = vperm.xlu0 %374, %v327
  %v376 = vpop.permute.xlu0 %375
  %v378 = vmul.f32 %v376, %v92
  %379 = vset.pattern.permute.xlu0 10
  %380 = vperm.xlu0 %379, %v327
  %v381 = vpop.permute.xlu0 %380
  %v383 = vmul.f32 %v381, %v93
  %384 = vset.pattern.permute.xlu0 11
  %385 = vperm.xlu0 %384, %v327
  %v386 = vpop.permute.xlu0 %385
  %v388 = vmul.f32 %v386, %v94
  %389 = vset.pattern.permute.xlu0 12
  %390 = vperm.xlu0 %389, %v327
  %v391 = vpop.permute.xlu0 %390
  %v393 = vmul.f32 %v391, %v95
  %394 = vset.pattern.permute.xlu0 13
  %395 = vperm.xlu0 %394, %v327
  %v396 = vpop.permute.xlu0 %395
  %v398 = vmul.f32 %v396, %v96
  %399 = vset.pattern.permute.xlu0 14
  %400 = vperm.xlu0 %399, %v327
  %v401 = vpop.permute.xlu0 %400
  %v403 = vmul.f32 %v401, %v97
  %404 = vset.pattern.permute.xlu0 15
  %405 = vperm.xlu0 %404, %v327
  %v406 = vpop.permute.xlu0 %405
  %v408 = vmul.f32 %v406, %v98
  %v409 = vadd.f32 %v333, %v338
  %v410 = vadd.f32 %v343, %v348
  %v411 = vadd.f32 %v353, %v358
  %v412 = vadd.f32 %v363, %v368
  %v413 = vadd.f32 %v373, %v378
  %v414 = vadd.f32 %v383, %v388
  %v415 = vadd.f32 %v393, %v398
  %v416 = vadd.f32 %v403, %v408
  %v417 = vadd.f32 %v409, %v410
  %v418 = vadd.f32 %v411, %v412
  %v419 = vadd.f32 %v413, %v414
  %v420 = vadd.f32 %v415, %v416
  %v421 = vadd.f32 %v417, %v418
  %v422 = vadd.f32 %v419, %v420
  %v423 = vadd.f32 %v421, %v422
  %v424 = vadd.f32 %v78, %v423
  %v425 = vtanh.pop %v424
  %427 = vset.pattern.permute.xlu0 0
  %428 = vperm.xlu0 %427, %v425
  %v429 = vpop.permute.xlu0 %428
  %v431 = vmul.f32 %v429, %v83
  %432 = vset.pattern.permute.xlu0 1
  %433 = vperm.xlu0 %432, %v425
  %v434 = vpop.permute.xlu0 %433
  %v436 = vmul.f32 %v434, %v84
  %437 = vset.pattern.permute.xlu0 2
  %438 = vperm.xlu0 %437, %v425
  %v439 = vpop.permute.xlu0 %438
  %v441 = vmul.f32 %v439, %v85
  %442 = vset.pattern.permute.xlu0 3
  %443 = vperm.xlu0 %442, %v425
  %v444 = vpop.permute.xlu0 %443
  %v446 = vmul.f32 %v444, %v86
  %447 = vset.pattern.permute.xlu0 4
  %448 = vperm.xlu0 %447, %v425
  %v449 = vpop.permute.xlu0 %448
  %v451 = vmul.f32 %v449, %v87
  %452 = vset.pattern.permute.xlu0 5
  %453 = vperm.xlu0 %452, %v425
  %v454 = vpop.permute.xlu0 %453
  %v456 = vmul.f32 %v454, %v88
  %457 = vset.pattern.permute.xlu0 6
  %458 = vperm.xlu0 %457, %v425
  %v459 = vpop.permute.xlu0 %458
  %v461 = vmul.f32 %v459, %v89
  %462 = vset.pattern.permute.xlu0 7
  %463 = vperm.xlu0 %462, %v425
  %v464 = vpop.permute.xlu0 %463
  %v466 = vmul.f32 %v464, %v90
  %467 = vset.pattern.permute.xlu0 8
  %468 = vperm.xlu0 %467, %v425
  %v469 = vpop.permute.xlu0 %468
  %v471 = vmul.f32 %v469, %v91
  %472 = vset.pattern.permute.xlu0 9
  %473 = vperm.xlu0 %472, %v425
  %v474 = vpop.permute.xlu0 %473
  %v476 = vmul.f32 %v474, %v92
  %477 = vset.pattern.permute.xlu0 10
  %478 = vperm.xlu0 %477, %v425
  %v479 = vpop.permute.xlu0 %478
  %v481 = vmul.f32 %v479, %v93
  %482 = vset.pattern.permute.xlu0 11
  %483 = vperm.xlu0 %482, %v425
  %v484 = vpop.permute.xlu0 %483
  %v486 = vmul.f32 %v484, %v94
  %487 = vset.pattern.permute.xlu0 12
  %488 = vperm.xlu0 %487, %v425
  %v489 = vpop.permute.xlu0 %488
  %v491 = vmul.f32 %v489, %v95
  %492 = vset.pattern.permute.xlu0 13
  %493 = vperm.xlu0 %492, %v425
  %v494 = vpop.permute.xlu0 %493
  %v496 = vmul.f32 %v494, %v96
  %497 = vset.pattern.permute.xlu0 14
  %498 = vperm.xlu0 %497, %v425
  %v499 = vpop.permute.xlu0 %498
  %v501 = vmul.f32 %v499, %v97
  %502 = vset.pattern.permute.xlu0 15
  %503 = vperm.xlu0 %502, %v425
  %v504 = vpop.permute.xlu0 %503
  %v506 = vmul.f32 %v504, %v98
  %v507 = vadd.f32 %v431, %v436
  %v508 = vadd.f32 %v441, %v446
  %v509 = vadd.f32 %v451, %v456
  %v510 = vadd.f32 %v461, %v466
  %v511 = vadd.f32 %v471, %v476
  %v512 = vadd.f32 %v481, %v486
  %v513 = vadd.f32 %v491, %v496
  %v514 = vadd.f32 %v501, %v506
  %v515 = vadd.f32 %v507, %v508
  %v516 = vadd.f32 %v509, %v510
  %v517 = vadd.f32 %v511, %v512
  %v518 = vadd.f32 %v513, %v514
  %v519 = vadd.f32 %v515, %v516
  %v520 = vadd.f32 %v517, %v518
  %v521 = vadd.f32 %v519, %v520
  %v522 = vadd.f32 %v79, %v521
  %v523 = vtanh.pop %v522
  %525 = vset.pattern.permute.xlu0 0
  %526 = vperm.xlu0 %525, %v523
  %v527 = vpop.permute.xlu0 %526
  %v529 = vmul.f32 %v527, %v83
  %530 = vset.pattern.permute.xlu0 1
  %531 = vperm.xlu0 %530, %v523
  %v532 = vpop.permute.xlu0 %531
  %v534 = vmul.f32 %v532, %v84
  %535 = vset.pattern.permute.xlu0 2
  %536 = vperm.xlu0 %535, %v523
  %v537 = vpop.permute.xlu0 %536
  %v539 = vmul.f32 %v537, %v85
  %540 = vset.pattern.permute.xlu0 3
  %541 = vperm.xlu0 %540, %v523
  %v542 = vpop.permute.xlu0 %541
  %v544 = vmul.f32 %v542, %v86
  %545 = vset.pattern.permute.xlu0 4
  %546 = vperm.xlu0 %545, %v523
  %v547 = vpop.permute.xlu0 %546
  %v549 = vmul.f32 %v547, %v87
  %550 = vset.pattern.permute.xlu0 5
  %551 = vperm.xlu0 %550, %v523
  %v552 = vpop.permute.xlu0 %551
  %v554 = vmul.f32 %v552, %v88
  %555 = vset.pattern.permute.xlu0 6
  %556 = vperm.xlu0 %555, %v523
  %v557 = vpop.permute.xlu0 %556
  %v559 = vmul.f32 %v557, %v89
  %560 = vset.pattern.permute.xlu0 7
  %561 = vperm.xlu0 %560, %v523
  %v562 = vpop.permute.xlu0 %561
  %v564 = vmul.f32 %v562, %v90
  %565 = vset.pattern.permute.xlu0 8
  %566 = vperm.xlu0 %565, %v523
  %v567 = vpop.permute.xlu0 %566
  %v569 = vmul.f32 %v567, %v91
  %570 = vset.pattern.permute.xlu0 9
  %571 = vperm.xlu0 %570, %v523
  %v572 = vpop.permute.xlu0 %571
  %v574 = vmul.f32 %v572, %v92
  %575 = vset.pattern.permute.xlu0 10
  %576 = vperm.xlu0 %575, %v523
  %v577 = vpop.permute.xlu0 %576
  %v579 = vmul.f32 %v577, %v93
  %580 = vset.pattern.permute.xlu0 11
  %581 = vperm.xlu0 %580, %v523
  %v582 = vpop.permute.xlu0 %581
  %v584 = vmul.f32 %v582, %v94
  %585 = vset.pattern.permute.xlu0 12
  %586 = vperm.xlu0 %585, %v523
  %v587 = vpop.permute.xlu0 %586
  %v589 = vmul.f32 %v587, %v95
  %590 = vset.pattern.permute.xlu0 13
  %591 = vperm.xlu0 %590, %v523
  %v592 = vpop.permute.xlu0 %591
  %v594 = vmul.f32 %v592, %v96
  %595 = vset.pattern.permute.xlu0 14
  %596 = vperm.xlu0 %595, %v523
  %v597 = vpop.permute.xlu0 %596
  %v599 = vmul.f32 %v597, %v97
  %600 = vset.pattern.permute.xlu0 15
  %601 = vperm.xlu0 %600, %v523
  %v602 = vpop.permute.xlu0 %601
  %v604 = vmul.f32 %v602, %v98
  %v605 = vadd.f32 %v529, %v534
  %v606 = vadd.f32 %v539, %v544
  %v607 = vadd.f32 %v549, %v554
  %v608 = vadd.f32 %v559, %v564
  %v609 = vadd.f32 %v569, %v574
  %v610 = vadd.f32 %v579, %v584
  %v611 = vadd.f32 %v589, %v594
  %v612 = vadd.f32 %v599, %v604
  %v613 = vadd.f32 %v605, %v606
  %v614 = vadd.f32 %v607, %v608
  %v615 = vadd.f32 %v609, %v610
  %v616 = vadd.f32 %v611, %v612
  %v617 = vadd.f32 %v613, %v614
  %v618 = vadd.f32 %v615, %v616
  %v619 = vadd.f32 %v617, %v618
  %v620 = vadd.f32 %v80, %v619
  %v621 = vtanh.pop %v620
  %623 = vset.pattern.permute.xlu0 0
  %624 = vperm.xlu0 %623, %v621
  %v625 = vpop.permute.xlu0 %624
  %v627 = vmul.f32 %v625, %v83
  %628 = vset.pattern.permute.xlu0 1
  %629 = vperm.xlu0 %628, %v621
  %v630 = vpop.permute.xlu0 %629
  %v632 = vmul.f32 %v630, %v84
  %633 = vset.pattern.permute.xlu0 2
  %634 = vperm.xlu0 %633, %v621
  %v635 = vpop.permute.xlu0 %634
  %v637 = vmul.f32 %v635, %v85
  %638 = vset.pattern.permute.xlu0 3
  %639 = vperm.xlu0 %638, %v621
  %v640 = vpop.permute.xlu0 %639
  %v642 = vmul.f32 %v640, %v86
  %643 = vset.pattern.permute.xlu0 4
  %644 = vperm.xlu0 %643, %v621
  %v645 = vpop.permute.xlu0 %644
  %v647 = vmul.f32 %v645, %v87
  %648 = vset.pattern.permute.xlu0 5
  %649 = vperm.xlu0 %648, %v621
  %v650 = vpop.permute.xlu0 %649
  %v652 = vmul.f32 %v650, %v88
  %653 = vset.pattern.permute.xlu0 6
  %654 = vperm.xlu0 %653, %v621
  %v655 = vpop.permute.xlu0 %654
  %v657 = vmul.f32 %v655, %v89
  %658 = vset.pattern.permute.xlu0 7
  %659 = vperm.xlu0 %658, %v621
  %v660 = vpop.permute.xlu0 %659
  %v662 = vmul.f32 %v660, %v90
  %663 = vset.pattern.permute.xlu0 8
  %664 = vperm.xlu0 %663, %v621
  %v665 = vpop.permute.xlu0 %664
  %v667 = vmul.f32 %v665, %v91
  %668 = vset.pattern.permute.xlu0 9
  %669 = vperm.xlu0 %668, %v621
  %v670 = vpop.permute.xlu0 %669
  %v672 = vmul.f32 %v670, %v92
  %673 = vset.pattern.permute.xlu0 10
  %674 = vperm.xlu0 %673, %v621
  %v675 = vpop.permute.xlu0 %674
  %v677 = vmul.f32 %v675, %v93
  %678 = vset.pattern.permute.xlu0 11
  %679 = vperm.xlu0 %678, %v621
  %v680 = vpop.permute.xlu0 %679
  %v682 = vmul.f32 %v680, %v94
  %683 = vset.pattern.permute.xlu0 12
  %684 = vperm.xlu0 %683, %v621
  %v685 = vpop.permute.xlu0 %684
  %v687 = vmul.f32 %v685, %v95
  %688 = vset.pattern.permute.xlu0 13
  %689 = vperm.xlu0 %688, %v621
  %v690 = vpop.permute.xlu0 %689
  %v692 = vmul.f32 %v690, %v96
  %693 = vset.pattern.permute.xlu0 14
  %694 = vperm.xlu0 %693, %v621
  %v695 = vpop.permute.xlu0 %694
  %v697 = vmul.f32 %v695, %v97
  %698 = vset.pattern.permute.xlu0 15
  %699 = vperm.xlu0 %698, %v621
  %v700 = vpop.permute.xlu0 %699
  %v702 = vmul.f32 %v700, %v98
  %v703 = vadd.f32 %v627, %v632
  %v704 = vadd.f32 %v637, %v642
  %v705 = vadd.f32 %v647, %v652
  %v706 = vadd.f32 %v657, %v662
  %v707 = vadd.f32 %v667, %v672
  %v708 = vadd.f32 %v677, %v682
  %v709 = vadd.f32 %v687, %v692
  %v710 = vadd.f32 %v697, %v702
  %v711 = vadd.f32 %v703, %v704
  %v712 = vadd.f32 %v705, %v706
  %v713 = vadd.f32 %v707, %v708
  %v714 = vadd.f32 %v709, %v710
  %v715 = vadd.f32 %v711, %v712
  %v716 = vadd.f32 %v713, %v714
  %v717 = vadd.f32 %v715, %v716
  %v718 = vadd.f32 %v81, %v717
  %v719 = vtanh.pop %v718
  %721 = vset.pattern.permute.xlu0 0
  %722 = vperm.xlu0 %721, %v719
  %v723 = vpop.permute.xlu0 %722
  %v725 = vmul.f32 %v723, %v83
  %726 = vset.pattern.permute.xlu0 1
  %727 = vperm.xlu0 %726, %v719
  %v728 = vpop.permute.xlu0 %727
  %v730 = vmul.f32 %v728, %v84
  %731 = vset.pattern.permute.xlu0 2
  %732 = vperm.xlu0 %731, %v719
  %v733 = vpop.permute.xlu0 %732
  %v735 = vmul.f32 %v733, %v85
  %736 = vset.pattern.permute.xlu0 3
  %737 = vperm.xlu0 %736, %v719
  %v738 = vpop.permute.xlu0 %737
  %v740 = vmul.f32 %v738, %v86
  %741 = vset.pattern.permute.xlu0 4
  %742 = vperm.xlu0 %741, %v719
  %v743 = vpop.permute.xlu0 %742
  %v745 = vmul.f32 %v743, %v87
  %746 = vset.pattern.permute.xlu0 5
  %747 = vperm.xlu0 %746, %v719
  %v748 = vpop.permute.xlu0 %747
  %v750 = vmul.f32 %v748, %v88
  %751 = vset.pattern.permute.xlu0 6
  %752 = vperm.xlu0 %751, %v719
  %v753 = vpop.permute.xlu0 %752
  %v755 = vmul.f32 %v753, %v89
  %756 = vset.pattern.permute.xlu0 7
  %757 = vperm.xlu0 %756, %v719
  %v758 = vpop.permute.xlu0 %757
  %v760 = vmul.f32 %v758, %v90
  %761 = vset.pattern.permute.xlu0 8
  %762 = vperm.xlu0 %761, %v719
  %v763 = vpop.permute.xlu0 %762
  %v765 = vmul.f32 %v763, %v91
  %766 = vset.pattern.permute.xlu0 9
  %767 = vperm.xlu0 %766, %v719
  %v768 = vpop.permute.xlu0 %767
  %v770 = vmul.f32 %v768, %v92
  %771 = vset.pattern.permute.xlu0 10
  %772 = vperm.xlu0 %771, %v719
  %v773 = vpop.permute.xlu0 %772
  %v775 = vmul.f32 %v773, %v93
  %776 = vset.pattern.permute.xlu0 11
  %777 = vperm.xlu0 %776, %v719
  %v778 = vpop.permute.xlu0 %777
  %v780 = vmul.f32 %v778, %v94
  %781 = vset.pattern.permute.xlu0 12
  %782 = vperm.xlu0 %781, %v719
  %v783 = vpop.permute.xlu0 %782
  %v785 = vmul.f32 %v783, %v95
  %786 = vset.pattern.permute.xlu0 13
  %787 = vperm.xlu0 %786, %v719
  %v788 = vpop.permute.xlu0 %787
  %v790 = vmul.f32 %v788, %v96
  %791 = vset.pattern.permute.xlu0 14
  %792 = vperm.xlu0 %791, %v719
  %v793 = vpop.permute.xlu0 %792
  %v795 = vmul.f32 %v793, %v97
  %796 = vset.pattern.permute.xlu0 15
  %797 = vperm.xlu0 %796, %v719
  %v798 = vpop.permute.xlu0 %797
  %v800 = vmul.f32 %v798, %v98
  %v801 = vadd.f32 %v725, %v730
  %v802 = vadd.f32 %v735, %v740
  %v803 = vadd.f32 %v745, %v750
  %v804 = vadd.f32 %v755, %v760
  %v805 = vadd.f32 %v765, %v770
  %v806 = vadd.f32 %v775, %v780
  %v807 = vadd.f32 %v785, %v790
  %v808 = vadd.f32 %v795, %v800
  %v809 = vadd.f32 %v801, %v802
  %v810 = vadd.f32 %v803, %v804
  %v811 = vadd.f32 %v805, %v806
  %v812 = vadd.f32 %v807, %v808
  %v813 = vadd.f32 %v809, %v810
  %v814 = vadd.f32 %v811, %v812
  %v815 = vadd.f32 %v813, %v814
  %v816 = vadd.f32 %v82, %v815
  %v817 = vtanh.pop %v816
  %v818 = vperm.slane %v15, 0
  %v819 = vmul.f32 %v817, %v818
  %vm820 = vcmask 123904
  %v821 = vsel %vm820, %v819, 0.0
  %822 = vadd.xlane.f32.xlu0 %v821
  %v823 = vpop.xlane.xlu0 %822
  %v824 = vperm.slane %v16, 0
  %v825 = vadd.f32 %v823, %v824
  %vm826 = vcmask 1024
  %827 = vst.msk [vmem:[%s2] sm:$0x3] %vm826, %v825
  // Predicated region
  $region10: #{tpu_custom_call.1} parent=0 // pred_check
    _
  $region11: #{tpu_custom_call.1} parent=0 // pred_check_branch
    %829 = sbr.rel (0) target = $region13
  $region12: #{tpu_custom_call.1} parent=0 // pred_region
    _
  $region13: #{tpu_custom_call.1} parent=0 // pred_fallthru
    _
  // Predicated region
  $region14: #{tpu_custom_call.1} parent=0 // pred_check
    _
  $region15: #{tpu_custom_call.1} parent=0 // pred_check_branch
    %831 = sbr.rel (0) target = $region17
  $region16: #{tpu_custom_call.1} parent=0 // pred_region
    _
  $region17: #{tpu_custom_call.1} parent=0 // pred_fallthru
    _

</llo_original>
